<compile_context>
chip_gen: v7x
topology: tpu7x:2x2x1
jax: 0.10.0
libtpu: 0.0.40
codegen_flags: <defaults>
</compile_context>

<pallas_src>
import functools

import jax
import jax.numpy as jnp
from jax.experimental import pallas as pl
from jax.experimental.pallas import tpu as pltpu

NUM_FREQS = 4          # FourierEmbedding(4) -> out_channels = 1 + 2*4 = 9
LEAKY_SLOPE = 0.01     # nn.LeakyReLU() default
LN_EPS = 1e-5          # nn.LayerNorm default eps


def _lrelu(v):
    return jnp.where(v >= 0, v, LEAKY_SLOPE * v)


def _softplus(t):
    # numerically stable log(1 + exp(t))
    return jnp.maximum(t, 0.0) + jnp.log(1.0 + jnp.exp(-jnp.abs(t)))


# ----------------------------- Pallas kernel --------------------------------
def ib_kernel(feat_ref, noise_ref,
              enc_w_ref, enc_b_ref,
              bb_w_ref, bb_b_ref,
              dec_w_ref, dec_b_ref,
              p_ref, pt_ref, pt2_ref,
              out_ref,
              *, num_layers, num_groups, emb_dim):
    G, E = num_groups, emb_dim
    GE = G * E
    inv_e = 1.0 / float(E)

    # Fourier features were precomputed in the wrapper: (Bt, G*(1+2F)).
    # Per-group encode = one block-diagonal MXU matmul (no in-kernel trig).
    h = jnp.dot(feat_ref[...], enc_w_ref[...],
                preferred_element_type=jnp.float32) + enc_b_ref[...]
    h = _lrelu(h)

    # Backbone MLP: block-diagonal group weights -> one MXU matmul per layer.
    # TODO(synk): group-block tile the backbone into ~256-wide weight tiles
    # once G*C grows past ~512 (avoids G-fold redundant MXU MACs / VMEM and
    # matches the 256x256 MXU on v6e/v7x); optional bf16 weight storage there.
    for l in range(num_layers):
        h = jnp.dot(h, bb_w_ref[l], preferred_element_type=jnp.float32)
        h = _lrelu(h + bb_b_ref[l])

    # Fused decode heads: columns = [emb (GE) | w0 (G) | w1 (G) | mean (G)].
    # The per-group embedding mean is folded in as free extra MXU columns.
    # TODO(synk): pad head columns to 128-lane boundaries when GE grows enough
    # for the intra-tile slices below to matter.
    dec = jnp.dot(h, dec_w_ref[...],
                  preferred_element_type=jnp.float32) + dec_b_ref[...]
    e = dec[:, :GE]                                        # (Bt, GE)
    w0 = jnp.clip(dec[:, GE:GE + G], -6.0, 6.0)            # (Bt, G)
    w1 = jnp.clip(dec[:, GE + G:GE + 2 * G], -6.0, 6.0)    # (Bt, G)
    mean = dec[:, GE + 2 * G:GE + 3 * G]                   # (Bt, G)

    P = p_ref[...]        # (GE, G)   group-sum selector
    PT = pt_ref[...]      # (G, GE)   group-broadcast selector
    PT2 = pt2_ref[...]    # (2G, 2GE) blockdiag(PT, PT)

    # Per-group LayerNorm(E, elementwise_affine=False)
    cent = e - jnp.dot(mean, PT, preferred_element_type=jnp.float32)
    var = jnp.dot(cent * cent, P, preferred_element_type=jnp.float32) * inv_e
    rstd = jax.lax.rsqrt(var + LN_EPS)                     # (Bt, G)

    # 2-way log_softmax in closed form, one softplus only:
    #   nw = sigmoid(d) = exp(log_softmax[...,1]); ew = 1 - nw.
    d = w1 - w0
    sp_nd = _softplus(-d)
    nw = jnp.exp(-sp_nd)                                   # (Bt, G)
    ew = 1.0 - nw                                          # (Bt, G)
    log_var = -2.0 * sp_nd                                 # 2 * log_softmax[...,1]

    # Fused group->embedding broadcasts: [rstd*ew | nw] @ blockdiag(PT, PT).
    sb = jnp.dot(jnp.concatenate([rstd * ew, nw], axis=-1), PT2,
                 preferred_element_type=jnp.float32)       # (Bt, 2GE)
    mu = cent * sb[:, :GE]                                 # = LN(e) * ew  (per group)
    samples = mu + noise_ref[...] * sb[:, GE:]

    # KL: 0.5 * sum_E(exp(log_var) + mu^2 - 1 - log_var); exp(log_var) = nw^2
    # and the scalar terms are constant over E -> fold into E * (...).
    sum_mu2 = jnp.dot(mu * mu, P, preferred_element_type=jnp.float32)
    dkl = 0.5 * (sum_mu2 + float(E) * (nw * nw - 1.0 - log_var))

    # Lane-dense combined output slab: [samples (GE) | d_kl (G) | zero pad].
    pad = out_ref.shape[-1] - (GE + G)
    pieces = [samples, dkl]
    if pad > 0:
        pieces.append(jnp.zeros((samples.shape[0], pad), jnp.float32))
    out_ref[...] = jnp.concatenate(pieces, axis=-1)


# ---------------------- one-time parameter packing ---------------------------
def pack_ib_params(params):
    """Packs per-group weights into block-diagonal / fused slabs.

    Call once (outside the forward path) so the L*(GC)^2 packed arrays are not
    re-materialised in HBM on every forward call.
    """
    f32 = jnp.float32
    enc_w = params['enc_w'].astype(f32)                # (G, 1+2F, C)
    G, K, C = enc_w.shape
    E = params['de_b'].shape[-1]
    L = int(params['bb_w'].shape[0])
    GC, GE = G * C, G * E

    eye = jnp.eye(G, dtype=f32)

    enc_w_bd = jnp.einsum('gh,gkc->gkhc', eye, enc_w).reshape(G * K, GC)
    enc_b = params['enc_b'].astype(f32).reshape(1, GC)

    bb_w_bd = jnp.einsum('gh,lgij->lgihj', eye,
                         params['bb_w'].astype(f32)).reshape(L, GC, GC)
    bb_b = params['bb_b'].astype(f32).reshape(L, 1, GC)

    de_w = params['de_w'].astype(f32)                  # (G, C, E)
    de_bd = jnp.einsum('gh,gce->gche', eye, de_w).reshape(GC, GE)
    dw = params['dw_w'].astype(f32)                    # (G, C, 2)
    w0col = jnp.einsum('gh,gc->gch', eye, dw[:, :, 0]).reshape(GC, G)
    w1col = jnp.einsum('gh,gc->gch', eye, dw[:, :, 1]).reshape(GC, G)
    mean_col = de_bd.reshape(GC, G, E).mean(-1)        # per-group mean head (GC, G)
    dec_w = jnp.concatenate([de_bd, w0col, w1col, mean_col], axis=1)

    de_b = params['de_b'].astype(f32)                  # (G, E)
    dw_b = params['dw_b'].astype(f32)                  # (G, 2)
    dec_b = jnp.concatenate(
        [de_b.reshape(GE), dw_b[:, 0], dw_b[:, 1], de_b.mean(-1)]
    ).reshape(1, GE + 3 * G)

    gid = jnp.arange(GE, dtype=jnp.int32) // E
    P = (gid[:, None] == jnp.arange(G, dtype=jnp.int32)[None, :]).astype(f32)
    PT = P.T
    Z = jnp.zeros_like(PT)
    PT2 = jnp.concatenate(
        [jnp.concatenate([PT, Z], axis=1),
         jnp.concatenate([Z, PT], axis=1)], axis=0)    # blockdiag(PT, PT)

    packed = dict(enc_w=enc_w_bd, enc_b=enc_b, bb_w=bb_w_bd, bb_b=bb_b,
                  dec_w=dec_w, dec_b=dec_b, P=P, PT=PT, PT2=PT2)
    meta = dict(G=G, C=C, E=E, L=L, K=K)
    return packed, meta


# ------------------------------- forward -------------------------------------
def information_bottleneck_v2(x, noise, packed, meta):
    """x: (B, G); noise: (B, G, E) -> samples (B, G*E), d_kl (B, G)."""
    f32 = jnp.float32
    G, C, E, L, K = meta['G'], meta['C'], meta['E'], meta['L'], meta['K']
    F = (K - 1) // 2
    GC, GE = G * C, G * E
    FW = G * K                      # Fourier feature width
    DW = GE + 3 * G                 # fused decode width
    B = x.shape[0]

    # Fourier features precomputed on the tiny (B, G) input (wrapper-side).
    freqs = 2.0 ** jnp.arange(F, dtype=f32)
    xs = x.astype(f32)[..., None]                          # (B, G, 1)
    xsc = xs * freqs
    feat = jnp.concatenate([xs, jnp.sin(xsc), jnp.cos(xsc)], axis=-1)
    feat = feat.reshape(B, FW)
    noise_flat = noise.astype(f32).reshape(B, GE)

    # Batch tiling: aim for >=2 grid steps (v7x has 2 TensorCores), cap 512,
    # and zero-pad the batch to a multiple of the tile (cropped on output).
    if B <= 8:
        Bt = B
    else:
        Bt = min(512, ((-(-B // 2)) + 7) // 8 * 8)
    Bp = -(-B // Bt) * Bt
    if Bp != B:
        pad_rows = ((0, Bp - B), (0, 0))
        feat = jnp.pad(feat, pad_rows)
        noise_flat = jnp.pad(noise_flat, pad_rows)
    grid = (Bp // Bt,)

    OW = -(-(GE + G) // 128) * 128                         # lane-dense output width

    # Explicit VMEM budget: double-buffered streams + single-buffered weights
    # (2x safety in case single-buffering is unavailable) + live intermediates.
    by = 4
    stream = 2 * Bt * (FW + GE + OW) * by
    resident = by * (FW * GC + GC + L * GC * GC + L * GC + GC * DW + DW
                     + GE * G + G * GE + 4 * G * GE)
    live = by * Bt * (2 * GC + DW + 4 * GE + 8 * G)
    vmem_limit = min(max(int(1.25 * (stream + 2 * resident + live)), 32 << 20),
                     56 << 20)

    kernel = functools.partial(ib_kernel, num_layers=L, num_groups=G, emb_dim=E)

    def resident_spec(shape):
        # Grid-invariant operand (constant index map): single VMEM buffer.
        idx = lambda i: (0,) * len(shape)
        try:
            return pl.BlockSpec(shape, idx, pipeline_mode=pl.Buffered(1))
        except TypeError:
            return pl.BlockSpec(shape, idx)

    def build(single_buffer_weights):
        spec = resident_spec if single_buffer_weights else (
            lambda shape: pl.BlockSpec(shape, lambda i: (0,) * len(shape)))
        grid_spec = pltpu.PrefetchScalarGridSpec(
            num_scalar_prefetch=0,
            grid=grid,
            in_specs=[
                pl.BlockSpec((Bt, FW), lambda i: (i, 0)),   # Fourier feats (streamed)
                pl.BlockSpec((Bt, GE), lambda i: (i, 0)),   # noise (streamed)
                spec((FW, GC)),                             # encode W (resident)
                spec((1, GC)),                              # encode b
                spec((L, GC, GC)),                          # backbone W
                spec((L, 1, GC)),                           # backbone b
                spec((GC, DW)),                             # fused decode W
                spec((1, DW)),                              # fused decode b
                spec((GE, G)),                              # P
                spec((G, GE)),                              # P^T
                spec((2 * G, 2 * GE)),                      # blockdiag(P^T, P^T)
            ],
            out_specs=pl.BlockSpec((Bt, OW), lambda i: (i, 0)),
        )
        return pl.pallas_call(
            kernel,
            out_shape=jax.ShapeDtypeStruct((Bp, OW), f32),
            grid_spec=grid_spec,
            compiler_params=pltpu.CompilerParams(
                dimension_semantics=("parallel",),
                vmem_limit_bytes=vmem_limit),
        )

    args = (feat, noise_flat, packed['enc_w'], packed['enc_b'],
            packed['bb_w'], packed['bb_b'], packed['dec_w'], packed['dec_b'],
            packed['P'], packed['PT'], packed['PT2'])
    try:
        out = build(True)(*args)
    except Exception:
        # Fallback if this jax build rejects single-buffered (Buffered(1)) specs.
        out = build(False)(*args)

    samples = out[:B, :GE]
    d_kl = out[:B, GE:GE + G]
    return samples, d_kl


# ---------------- pure-JAX reference (mirrors the PyTorch module) ------------
def reference(x, noise, params):
    freqs = 2.0 ** jnp.arange(NUM_FREQS, dtype=jnp.float32)
    xs = x[..., None]
    xsc = xs * freqs
    emb_in = jnp.concatenate([xs, jnp.sin(xsc), jnp.cos(xsc)], axis=-1)

    def mgl(v, w, b):
        return jnp.einsum('bgi,gio->bgo', v, w) + b[None]

    feat = mgl(emb_in, params['enc_w'], params['enc_b'])
    feat = _lrelu(feat)
    for l in range(params['bb_w'].shape[0]):
        feat = _lrelu(mgl(feat, params['bb_w'][l], params['bb_b'][l]))

    e = mgl(feat, params['de_w'], params['de_b'])
    mean = e.mean(-1, keepdims=True)
    var = ((e - mean) ** 2).mean(-1, keepdims=True)
    embn = (e - mean) / jnp.sqrt(var + LN_EPS)

    w = jnp.clip(mgl(feat, params['dw_w'], params['dw_b']), -6.0, 6.0)
    lw = jax.nn.log_softmax(w, axis=-1)
    ew = jnp.exp(lw[..., 0:1])
    nw = jnp.exp(lw[..., 1:2])
    log_var = 2.0 * lw[..., 1:2]
    mu = embn * ew
    d_kl = 0.5 * jnp.sum(jnp.exp(log_var) + mu ** 2 - 1.0 - log_var, axis=-1)
    samples = (embn * ew + noise * nw).reshape(x.shape[0], -1)
    return samples, d_kl


# ---------------- deterministic parameter construction ----------------------
def make_params(key, G, C, E, L):
    ks = jax.random.split(key, 8)
    u = lambda k, shp, a: jax.random.uniform(k, shp, jnp.float32, -a, a)
    return {
        'enc_w': u(ks[0], (G, 1 + 2 * NUM_FREQS, C), 0.5),
        'enc_b': u(ks[1], (G, C), 0.05),
        'bb_w':  u(ks[2], (L, G, C, C), 0.05),
        'bb_b':  u(ks[3], (L, G, C), 0.05),
        'de_w':  u(ks[4], (G, C, E), 0.3),
        'de_b':  u(ks[5], (G, E), 0.05),
        'dw_w':  u(ks[6], (G, C, 2), 0.3),
        'dw_b':  u(ks[7], (G, 2), 0.05),
    }


if __name__ == "__main__":
    G, C, E, L = 4, 32, 8, 1     # groups, backbone width, emb dim, layers
    key = jax.random.PRNGKey(0)
    kx, kn, kp = jax.random.split(key, 3)
    params = make_params(kp, G, C, E, L)
    packed, meta = pack_ib_params(params)       # one-time packing (hoisted)

    for B in (8, 12):                            # 12 exercises batch padding + 2-step grid
        kxb, knb = jax.random.split(jax.random.fold_in(kx, B))
        x = jax.random.normal(kxb, (B, G), jnp.float32)
        noise = jax.random.normal(knb, (B, G, E), jnp.float32)

        samples, d_kl = information_bottleneck_v2(x, noise, packed, meta)
        samples = jax.block_until_ready(samples)
        d_kl = jax.block_until_ready(d_kl)

        ref_samples, ref_dkl = reference(x, noise, params)
        assert samples.shape == (B, G * E) and d_kl.shape == (B, G)
        assert jnp.allclose(samples, ref_samples, atol=1e-4, rtol=1e-4)
        assert jnp.allclose(d_kl, ref_dkl, atol=1e-4, rtol=1e-4)

    print("KERNEL_OK")
</pallas_src>

<mosaic_0001>
module attributes {stable_mosaic.version = 11 : i64} {
  func.func @ib_kernel(%arg0: i32, %arg1: memref<8x36xf32, #tpu.memory_space<vmem>>, %arg2: memref<8x32xf32, #tpu.memory_space<vmem>>, %arg3: memref<36x128xf32, #tpu.memory_space<vmem>>, %arg4: memref<1x128xf32, #tpu.memory_space<vmem>>, %arg5: memref<1x128x128xf32, #tpu.memory_space<vmem>>, %arg6: memref<1x1x128xf32, #tpu.memory_space<vmem>>, %arg7: memref<128x44xf32, #tpu.memory_space<vmem>>, %arg8: memref<1x44xf32, #tpu.memory_space<vmem>>, %arg9: memref<32x4xf32, #tpu.memory_space<vmem>>, %arg10: memref<4x32xf32, #tpu.memory_space<vmem>>, %arg11: memref<8x64xf32, #tpu.memory_space<vmem>>, %arg12: memref<8x128xf32, #tpu.memory_space<vmem>>) attributes {dimension_semantics = [#tpu.dimension_semantics<parallel>], iteration_bounds = array<i64: 1>, scalar_prefetch = 0 : i64, scratch_operands = 0 : i64, tpu.core_type = #tpu.core_type<tc>, window_params = [{transform_indices = @transform_0, window_bounds = array<i64: 8, 36>}, {transform_indices = @transform_1, window_bounds = array<i64: 8, 32>}, {pipeline_mode = #tpu.pipeline_mode<synchronous>, transform_indices = @transform_2, window_bounds = array<i64: 36, 128>}, {pipeline_mode = #tpu.pipeline_mode<synchronous>, transform_indices = @transform_3, window_bounds = array<i64: 1, 128>}, {pipeline_mode = #tpu.pipeline_mode<synchronous>, transform_indices = @transform_4, window_bounds = array<i64: 1, 128, 128>}, {pipeline_mode = #tpu.pipeline_mode<synchronous>, transform_indices = @transform_5, window_bounds = array<i64: 1, 1, 128>}, {pipeline_mode = #tpu.pipeline_mode<synchronous>, transform_indices = @transform_6, window_bounds = array<i64: 128, 44>}, {pipeline_mode = #tpu.pipeline_mode<synchronous>, transform_indices = @transform_7, window_bounds = array<i64: 1, 44>}, {pipeline_mode = #tpu.pipeline_mode<synchronous>, transform_indices = @transform_8, window_bounds = array<i64: 32, 4>}, {pipeline_mode = #tpu.pipeline_mode<synchronous>, transform_indices = @transform_9, window_bounds = array<i64: 4, 32>}, {pipeline_mode = #tpu.pipeline_mode<synchronous>, transform_indices = @transform_10, window_bounds = array<i64: 8, 64>}, {transform_indices = @transform_11, window_bounds = array<i64: 8, 128>}]} {
    %c0 = arith.constant 0 : index
    %c0_0 = arith.constant 0 : index
    %0 = vector.load %arg1[%c0, %c0_0] : memref<8x36xf32, #tpu.memory_space<vmem>>, vector<8x36xf32>
    %c0_1 = arith.constant 0 : index
    %c0_2 = arith.constant 0 : index
    %1 = vector.load %arg3[%c0_1, %c0_2] : memref<36x128xf32, #tpu.memory_space<vmem>>, vector<36x128xf32>
    %cst = arith.constant dense<0.000000e+00> : vector<8x128xf32>
    %2 = tpu.matmul %0, %1, %cst {dimension_numbers = #tpu.dot_dimension_numbers<[1], [0], [0], [1], [0, 0, 1, 1], [], []>} : vector<8x36xf32>, vector<36x128xf32>, vector<8x128xf32> -> vector<8x128xf32>
    %c0_3 = arith.constant 0 : index
    %c0_4 = arith.constant 0 : index
    %3 = vector.load %arg4[%c0_3, %c0_4] : memref<1x128xf32, #tpu.memory_space<vmem>>, vector<1x128xf32>
    %4 = vector.broadcast %3 : vector<1x128xf32> to vector<8x128xf32>
    %5 = arith.addf %2, %4 : vector<8x128xf32>
    %cst_5 = arith.constant 0.000000e+00 : f32
    %6 = vector.broadcast %cst_5 : f32 to vector<8x128xf32>
    %7 = arith.cmpf oge, %5, %6 : vector<8x128xf32>
    %cst_6 = arith.constant 0.00999999977 : f32
    %8 = vector.broadcast %cst_6 : f32 to vector<8x128xf32>
    %9 = arith.mulf %8, %5 : vector<8x128xf32>
    %10 = arith.select %7, %5, %9 : vector<8x128xi1>, vector<8x128xf32>
    %c0_7 = arith.constant 0 : index
    %c0_8 = arith.constant 0 : index
    %c0_9 = arith.constant 0 : index
    %11 = vector.load %arg5[%c0_7, %c0_8, %c0_9] : memref<1x128x128xf32, #tpu.memory_space<vmem>>, vector<1x128x128xf32>
    %12 = vector.shape_cast %11 : vector<1x128x128xf32> to vector<128x128xf32>
    %cst_10 = arith.constant dense<0.000000e+00> : vector<8x128xf32>
    %13 = tpu.matmul %10, %12, %cst_10 {dimension_numbers = #tpu.dot_dimension_numbers<[1], [0], [0], [1], [0, 0, 1, 1], [], []>} : vector<8x128xf32>, vector<128x128xf32>, vector<8x128xf32> -> vector<8x128xf32>
    %c0_11 = arith.constant 0 : index
    %c0_12 = arith.constant 0 : index
    %c0_13 = arith.constant 0 : index
    %14 = vector.load %arg6[%c0_11, %c0_12, %c0_13] : memref<1x1x128xf32, #tpu.memory_space<vmem>>, vector<1x1x128xf32>
    %15 = vector.shape_cast %14 : vector<1x1x128xf32> to vector<1x128xf32>
    %16 = vector.broadcast %15 : vector<1x128xf32> to vector<8x128xf32>
    %17 = arith.addf %13, %16 : vector<8x128xf32>
    %cst_14 = arith.constant 0.000000e+00 : f32
    %18 = vector.broadcast %cst_14 : f32 to vector<8x128xf32>
    %19 = arith.cmpf oge, %17, %18 : vector<8x128xf32>
    %cst_15 = arith.constant 0.00999999977 : f32
    %20 = vector.broadcast %cst_15 : f32 to vector<8x128xf32>
    %21 = arith.mulf %20, %17 : vector<8x128xf32>
    %22 = arith.select %19, %17, %21 : vector<8x128xi1>, vector<8x128xf32>
    %c0_16 = arith.constant 0 : index
    %c0_17 = arith.constant 0 : index
    %23 = vector.load %arg7[%c0_16, %c0_17] : memref<128x44xf32, #tpu.memory_space<vmem>>, vector<128x44xf32>
    %cst_18 = arith.constant dense<0.000000e+00> : vector<8x44xf32>
    %24 = tpu.matmul %22, %23, %cst_18 {dimension_numbers = #tpu.dot_dimension_numbers<[1], [0], [0], [1], [0, 0, 1, 1], [], []>} : vector<8x128xf32>, vector<128x44xf32>, vector<8x44xf32> -> vector<8x44xf32>
    %c0_19 = arith.constant 0 : index
    %c0_20 = arith.constant 0 : index
    %25 = vector.load %arg8[%c0_19, %c0_20] : memref<1x44xf32, #tpu.memory_space<vmem>>, vector<1x44xf32>
    %26 = vector.broadcast %25 : vector<1x44xf32> to vector<8x44xf32>
    %27 = arith.addf %24, %26 : vector<8x44xf32>
    %28 = vector.extract_strided_slice %27 {offsets = [0, 0], sizes = [8, 32], strides = [1, 1]} : vector<8x44xf32> to vector<8x32xf32>
    %29 = vector.extract_strided_slice %27 {offsets = [0, 32], sizes = [8, 4], strides = [1, 1]} : vector<8x44xf32> to vector<8x4xf32>
    %cst_21 = arith.constant -6.000000e+00 : f32
    %cst_22 = arith.constant 6.000000e+00 : f32
    %30 = vector.broadcast %cst_21 : f32 to vector<8x4xf32>
    %31 = arith.maximumf %30, %29 : vector<8x4xf32>
    %32 = vector.broadcast %cst_22 : f32 to vector<8x4xf32>
    %33 = arith.minimumf %32, %31 : vector<8x4xf32>
    %34 = vector.extract_strided_slice %27 {offsets = [0, 36], sizes = [8, 4], strides = [1, 1]} : vector<8x44xf32> to vector<8x4xf32>
    %cst_23 = arith.constant -6.000000e+00 : f32
    %cst_24 = arith.constant 6.000000e+00 : f32
    %35 = vector.broadcast %cst_23 : f32 to vector<8x4xf32>
    %36 = arith.maximumf %35, %34 : vector<8x4xf32>
    %37 = vector.broadcast %cst_24 : f32 to vector<8x4xf32>
    %38 = arith.minimumf %37, %36 : vector<8x4xf32>
    %39 = vector.extract_strided_slice %27 {offsets = [0, 40], sizes = [8, 4], strides = [1, 1]} : vector<8x44xf32> to vector<8x4xf32>
    %c0_25 = arith.constant 0 : index
    %c0_26 = arith.constant 0 : index
    %40 = vector.load %arg9[%c0_25, %c0_26] : memref<32x4xf32, #tpu.memory_space<vmem>>, vector<32x4xf32>
    %c0_27 = arith.constant 0 : index
    %c0_28 = arith.constant 0 : index
    %41 = vector.load %arg10[%c0_27, %c0_28] : memref<4x32xf32, #tpu.memory_space<vmem>>, vector<4x32xf32>
    %c0_29 = arith.constant 0 : index
    %c0_30 = arith.constant 0 : index
    %42 = vector.load %arg11[%c0_29, %c0_30] : memref<8x64xf32, #tpu.memory_space<vmem>>, vector<8x64xf32>
    %cst_31 = arith.constant dense<0.000000e+00> : vector<8x32xf32>
    %43 = tpu.matmul %39, %41, %cst_31 {dimension_numbers = #tpu.dot_dimension_numbers<[1], [0], [0], [1], [0, 0, 1, 1], [], []>} : vector<8x4xf32>, vector<4x32xf32>, vector<8x32xf32> -> vector<8x32xf32>
    %44 = arith.subf %28, %43 : vector<8x32xf32>
    %45 = arith.mulf %44, %44 : vector<8x32xf32>
    %cst_32 = arith.constant dense<0.000000e+00> : vector<8x4xf32>
    %46 = tpu.matmul %45, %40, %cst_32 {dimension_numbers = #tpu.dot_dimension_numbers<[1], [0], [0], [1], [0, 0, 1, 1], [], []>} : vector<8x32xf32>, vector<32x4xf32>, vector<8x4xf32> -> vector<8x4xf32>
    %cst_33 = arith.constant 1.250000e-01 : f32
    %47 = vector.broadcast %cst_33 : f32 to vector<8x4xf32>
    %48 = arith.mulf %46, %47 : vector<8x4xf32>
    %cst_34 = arith.constant 9.99999974E-6 : f32
    %49 = vector.broadcast %cst_34 : f32 to vector<8x4xf32>
    %50 = arith.addf %48, %49 : vector<8x4xf32>
    %51 = math.rsqrt %50 : vector<8x4xf32>
    %52 = arith.subf %38, %33 : vector<8x4xf32>
    %cst_35 = arith.constant 0.000000e+00 : f32
    %53 = vector.broadcast %cst_35 : f32 to vector<8x4xf32>
    %54 = arith.subf %53, %52 : vector<8x4xf32>
    %cst_36 = arith.constant 0.000000e+00 : f32
    %55 = vector.broadcast %cst_36 : f32 to vector<8x4xf32>
    %56 = arith.maximumf %54, %55 : vector<8x4xf32>
    %57 = math.absf %54 : vector<8x4xf32>
    %cst_37 = arith.constant 0.000000e+00 : f32
    %58 = vector.broadcast %cst_37 : f32 to vector<8x4xf32>
    %59 = arith.subf %58, %57 : vector<8x4xf32>
    %60 = math.exp %59 : vector<8x4xf32>
    %cst_38 = arith.constant 1.000000e+00 : f32
    %61 = vector.broadcast %cst_38 : f32 to vector<8x4xf32>
    %62 = arith.addf %61, %60 : vector<8x4xf32>
    %63 = math.log %62 : vector<8x4xf32>
    %64 = arith.addf %56, %63 : vector<8x4xf32>
    %cst_39 = arith.constant 0.000000e+00 : f32
    %65 = vector.broadcast %cst_39 : f32 to vector<8x4xf32>
    %66 = arith.subf %65, %64 : vector<8x4xf32>
    %67 = math.exp %66 : vector<8x4xf32>
    %cst_40 = arith.constant 1.000000e+00 : f32
    %68 = vector.broadcast %cst_40 : f32 to vector<8x4xf32>
    %69 = arith.subf %68, %67 : vector<8x4xf32>
    %cst_41 = arith.constant -2.000000e+00 : f32
    %70 = vector.broadcast %cst_41 : f32 to vector<8x4xf32>
    %71 = arith.mulf %70, %64 : vector<8x4xf32>
    %72 = arith.mulf %51, %69 : vector<8x4xf32>
    %73 = tpu.concatenate %72, %67 in 1 : vector<8x4xf32>, vector<8x4xf32> -> vector<8x8xf32>
    %cst_42 = arith.constant dense<0.000000e+00> : vector<8x64xf32>
    %74 = tpu.matmul %73, %42, %cst_42 {dimension_numbers = #tpu.dot_dimension_numbers<[1], [0], [0], [1], [0, 0, 1, 1], [], []>} : vector<8x8xf32>, vector<8x64xf32>, vector<8x64xf32> -> vector<8x64xf32>
    %75 = vector.extract_strided_slice %74 {offsets = [0, 0], sizes = [8, 32], strides = [1, 1]} : vector<8x64xf32> to vector<8x32xf32>
    %76 = arith.mulf %44, %75 : vector<8x32xf32>
    %c0_43 = arith.constant 0 : index
    %c0_44 = arith.constant 0 : index
    %77 = vector.load %arg2[%c0_43, %c0_44] : memref<8x32xf32, #tpu.memory_space<vmem>>, vector<8x32xf32>
    %78 = vector.extract_strided_slice %74 {offsets = [0, 32], sizes = [8, 32], strides = [1, 1]} : vector<8x64xf32> to vector<8x32xf32>
    %79 = arith.mulf %77, %78 : vector<8x32xf32>
    %80 = arith.addf %76, %79 : vector<8x32xf32>
    %81 = arith.mulf %76, %76 : vector<8x32xf32>
    %cst_45 = arith.constant dense<0.000000e+00> : vector<8x4xf32>
    %82 = tpu.matmul %81, %40, %cst_45 {dimension_numbers = #tpu.dot_dimension_numbers<[1], [0], [0], [1], [0, 0, 1, 1], [], []>} : vector<8x32xf32>, vector<32x4xf32>, vector<8x4xf32> -> vector<8x4xf32>
    %83 = arith.mulf %67, %67 : vector<8x4xf32>
    %cst_46 = arith.constant 1.000000e+00 : f32
    %84 = vector.broadcast %cst_46 : f32 to vector<8x4xf32>
    %85 = arith.subf %83, %84 : vector<8x4xf32>
    %86 = arith.subf %85, %71 : vector<8x4xf32>
    %cst_47 = arith.constant 8.000000e+00 : f32
    %87 = vector.broadcast %cst_47 : f32 to vector<8x4xf32>
    %88 = arith.mulf %87, %86 : vector<8x4xf32>
    %89 = arith.addf %82, %88 : vector<8x4xf32>
    %cst_48 = arith.constant 5.000000e-01 : f32
    %90 = vector.broadcast %cst_48 : f32 to vector<8x4xf32>
    %91 = arith.mulf %90, %89 : vector<8x4xf32>
    %cst_49 = arith.constant 0.000000e+00 : f32
    %92 = vector.broadcast %cst_49 : f32 to vector<8x92xf32>
    %93 = tpu.concatenate %80, %91, %92 in 1 : vector<8x32xf32>, vector<8x4xf32>, vector<8x92xf32> -> vector<8x128xf32>
    %c0_50 = arith.constant 0 : index
    %c0_51 = arith.constant 0 : index
    %94 = vector.load %arg12[%c0_50, %c0_51] : memref<8x128xf32, #tpu.memory_space<vmem>>, vector<8x128xf32>
    tpu.vector_store %arg12[%c0_50, %c0_51], %93 {strides = array<i32>} : memref<8x128xf32, #tpu.memory_space<vmem>>, vector<8x128xf32>,
    return
  }
  func.func @transform_0(%arg0: i32) -> (i32, i32) {
    %c0_i32 = arith.constant 0 : i32
    %c0_i32_0 = arith.constant 0 : i32
    return %arg0, %c0_i32 : i32, i32
  }
  func.func @transform_1(%arg0: i32) -> (i32, i32) {
    %c0_i32 = arith.constant 0 : i32
    %c0_i32_0 = arith.constant 0 : i32
    return %arg0, %c0_i32 : i32, i32
  }
  func.func @transform_2(%arg0: i32) -> (i32, i32) {
    %c0_i32 = arith.constant 0 : i32
    %c0_i32_0 = arith.constant 0 : i32
    %c0_i32_1 = arith.constant 0 : i32
    return %c0_i32, %c0_i32_0 : i32, i32
  }
  func.func @transform_3(%arg0: i32) -> (i32, i32) {
    %c0_i32 = arith.constant 0 : i32
    %c0_i32_0 = arith.constant 0 : i32
    %c0_i32_1 = arith.constant 0 : i32
    return %c0_i32, %c0_i32_0 : i32, i32
  }
  func.func @transform_4(%arg0: i32) -> (i32, i32, i32) {
    %c0_i32 = arith.constant 0 : i32
    %c0_i32_0 = arith.constant 0 : i32
    %c0_i32_1 = arith.constant 0 : i32
    %c0_i32_2 = arith.constant 0 : i32
    return %c0_i32, %c0_i32_0, %c0_i32_1 : i32, i32, i32
  }
  func.func @transform_5(%arg0: i32) -> (i32, i32, i32) {
    %c0_i32 = arith.constant 0 : i32
    %c0_i32_0 = arith.constant 0 : i32
    %c0_i32_1 = arith.constant 0 : i32
    %c0_i32_2 = arith.constant 0 : i32
    return %c0_i32, %c0_i32_0, %c0_i32_1 : i32, i32, i32
  }
  func.func @transform_6(%arg0: i32) -> (i32, i32) {
    %c0_i32 = arith.constant 0 : i32
    %c0_i32_0 = arith.constant 0 : i32
    %c0_i32_1 = arith.constant 0 : i32
    return %c0_i32, %c0_i32_0 : i32, i32
  }
  func.func @transform_7(%arg0: i32) -> (i32, i32) {
    %c0_i32 = arith.constant 0 : i32
    %c0_i32_0 = arith.constant 0 : i32
    %c0_i32_1 = arith.constant 0 : i32
    return %c0_i32, %c0_i32_0 : i32, i32
  }
  func.func @transform_8(%arg0: i32) -> (i32, i32) {
    %c0_i32 = arith.constant 0 : i32
    %c0_i32_0 = arith.constant 0 : i32
    %c0_i32_1 = arith.constant 0 : i32
    return %c0_i32, %c0_i32_0 : i32, i32
  }
  func.func @transform_9(%arg0: i32) -> (i32, i32) {
    %c0_i32 = arith.constant 0 : i32
    %c0_i32_0 = arith.constant 0 : i32
    %c0_i32_1 = arith.constant 0 : i32
    return %c0_i32, %c0_i32_0 : i32, i32
  }
  func.func @transform_10(%arg0: i32) -> (i32, i32) {
    %c0_i32 = arith.constant 0 : i32
    %c0_i32_0 = arith.constant 0 : i32
    %c0_i32_1 = arith.constant 0 : i32
    return %c0_i32, %c0_i32_0 : i32, i32
  }
  func.func @transform_11(%arg0: i32) -> (i32, i32) {
    %c0_i32 = arith.constant 0 : i32
    %c0_i32_0 = arith.constant 0 : i32
    return %arg0, %c0_i32 : i32, i32
  }
}

module attributes {stable_mosaic.version = 11 : i64} {
  func.func @ib_kernel(%arg0: i32, %arg1: memref<8x36xf32, #tpu.memory_space<vmem>>, %arg2: memref<8x32xf32, #tpu.memory_space<vmem>>, %arg3: memref<36x128xf32, #tpu.memory_space<vmem>>, %arg4: memref<1x128xf32, #tpu.memory_space<vmem>>, %arg5: memref<1x128x128xf32, #tpu.memory_space<vmem>>, %arg6: memref<1x1x128xf32, #tpu.memory_space<vmem>>, %arg7: memref<128x44xf32, #tpu.memory_space<vmem>>, %arg8: memref<1x44xf32, #tpu.memory_space<vmem>>, %arg9: memref<32x4xf32, #tpu.memory_space<vmem>>, %arg10: memref<4x32xf32, #tpu.memory_space<vmem>>, %arg11: memref<8x64xf32, #tpu.memory_space<vmem>>, %arg12: memref<8x128xf32, #tpu.memory_space<vmem>>) attributes {dimension_semantics = [#tpu.dimension_semantics<parallel>], iteration_bounds = array<i64: 1>, scalar_prefetch = 0 : i64, scratch_operands = 0 : i64, tpu.core_type = #tpu.core_type<tc>, window_params = [{transform_indices = @transform_0, window_bounds = array<i64: 8, 36>}, {transform_indices = @transform_1, window_bounds = array<i64: 8, 32>}, {pipeline_mode = #tpu.pipeline_mode<synchronous>, transform_indices = @transform_2, window_bounds = array<i64: 36, 128>}, {pipeline_mode = #tpu.pipeline_mode<synchronous>, transform_indices = @transform_3, window_bounds = array<i64: 1, 128>}, {pipeline_mode = #tpu.pipeline_mode<synchronous>, transform_indices = @transform_4, window_bounds = array<i64: 1, 128, 128>}, {pipeline_mode = #tpu.pipeline_mode<synchronous>, transform_indices = @transform_5, window_bounds = array<i64: 1, 1, 128>}, {pipeline_mode = #tpu.pipeline_mode<synchronous>, transform_indices = @transform_6, window_bounds = array<i64: 128, 44>}, {pipeline_mode = #tpu.pipeline_mode<synchronous>, transform_indices = @transform_7, window_bounds = array<i64: 1, 44>}, {pipeline_mode = #tpu.pipeline_mode<synchronous>, transform_indices = @transform_8, window_bounds = array<i64: 32, 4>}, {pipeline_mode = #tpu.pipeline_mode<synchronous>, transform_indices = @transform_9, window_bounds = array<i64: 4, 32>}, {pipeline_mode = #tpu.pipeline_mode<synchronous>, transform_indices = @transform_10, window_bounds = array<i64: 8, 64>}, {transform_indices = @transform_11, window_bounds = array<i64: 8, 128>}]} {
    %c0 = arith.constant 0 : index
    %c0_0 = arith.constant 0 : index
    %0 = vector.load %arg1[%c0, %c0_0] : memref<8x36xf32, #tpu.memory_space<vmem>>, vector<8x36xf32>
    %c0_1 = arith.constant 0 : index
    %c0_2 = arith.constant 0 : index
    %1 = vector.load %arg3[%c0_1, %c0_2] : memref<36x128xf32, #tpu.memory_space<vmem>>, vector<36x128xf32>
    %cst = arith.constant dense<0.000000e+00> : vector<8x128xf32>
    %2 = tpu.matmul %0, %1, %cst {dimension_numbers = #tpu.dot_dimension_numbers<[1], [0], [0], [1], [0, 0, 1, 1], [], []>} : vector<8x36xf32>, vector<36x128xf32>, vector<8x128xf32> -> vector<8x128xf32>
    %c0_3 = arith.constant 0 : index
    %c0_4 = arith.constant 0 : index
    %3 = vector.load %arg4[%c0_3, %c0_4] : memref<1x128xf32, #tpu.memory_space<vmem>>, vector<1x128xf32>
    %4 = vector.broadcast %3 : vector<1x128xf32> to vector<8x128xf32>
    %5 = arith.addf %2, %4 : vector<8x128xf32>
    %cst_5 = arith.constant 0.000000e+00 : f32
    %6 = vector.broadcast %cst_5 : f32 to vector<8x128xf32>
    %7 = arith.cmpf oge, %5, %6 : vector<8x128xf32>
    %cst_6 = arith.constant 0.00999999977 : f32
    %8 = vector.broadcast %cst_6 : f32 to vector<8x128xf32>
    %9 = arith.mulf %8, %5 : vector<8x128xf32>
    %10 = arith.select %7, %5, %9 : vector<8x128xi1>, vector<8x128xf32>
    %c0_7 = arith.constant 0 : index
    %c0_8 = arith.constant 0 : index
    %c0_9 = arith.constant 0 : index
    %11 = vector.load %arg5[%c0_7, %c0_8, %c0_9] : memref<1x128x128xf32, #tpu.memory_space<vmem>>, vector<1x128x128xf32>
    %12 = vector.shape_cast %11 : vector<1x128x128xf32> to vector<128x128xf32>
    %cst_10 = arith.constant dense<0.000000e+00> : vector<8x128xf32>
    %13 = tpu.matmul %10, %12, %cst_10 {dimension_numbers = #tpu.dot_dimension_numbers<[1], [0], [0], [1], [0, 0, 1, 1], [], []>} : vector<8x128xf32>, vector<128x128xf32>, vector<8x128xf32> -> vector<8x128xf32>
    %c0_11 = arith.constant 0 : index
    %c0_12 = arith.constant 0 : index
    %c0_13 = arith.constant 0 : index
    %14 = vector.load %arg6[%c0_11, %c0_12, %c0_13] : memref<1x1x128xf32, #tpu.memory_space<vmem>>, vector<1x1x128xf32>
    %15 = vector.shape_cast %14 : vector<1x1x128xf32> to vector<1x128xf32>
    %16 = vector.broadcast %15 : vector<1x128xf32> to vector<8x128xf32>
    %17 = arith.addf %13, %16 : vector<8x128xf32>
    %cst_14 = arith.constant 0.000000e+00 : f32
    %18 = vector.broadcast %cst_14 : f32 to vector<8x128xf32>
    %19 = arith.cmpf oge, %17, %18 : vector<8x128xf32>
    %cst_15 = arith.constant 0.00999999977 : f32
    %20 = vector.broadcast %cst_15 : f32 to vector<8x128xf32>
    %21 = arith.mulf %20, %17 : vector<8x128xf32>
    %22 = arith.select %19, %17, %21 : vector<8x128xi1>, vector<8x128xf32>
    %c0_16 = arith.constant 0 : index
    %c0_17 = arith.constant 0 : index
    %23 = vector.load %arg7[%c0_16, %c0_17] : memref<128x44xf32, #tpu.memory_space<vmem>>, vector<128x44xf32>
    %cst_18 = arith.constant dense<0.000000e+00> : vector<8x44xf32>
    %24 = tpu.matmul %22, %23, %cst_18 {dimension_numbers = #tpu.dot_dimension_numbers<[1], [0], [0], [1], [0, 0, 1, 1], [], []>} : vector<8x128xf32>, vector<128x44xf32>, vector<8x44xf32> -> vector<8x44xf32>
    %c0_19 = arith.constant 0 : index
    %c0_20 = arith.constant 0 : index
    %25 = vector.load %arg8[%c0_19, %c0_20] : memref<1x44xf32, #tpu.memory_space<vmem>>, vector<1x44xf32>
    %26 = vector.broadcast %25 : vector<1x44xf32> to vector<8x44xf32>
    %27 = arith.addf %24, %26 : vector<8x44xf32>
    %28 = vector.extract_strided_slice %27 {offsets = [0, 0], sizes = [8, 32], strides = [1, 1]} : vector<8x44xf32> to vector<8x32xf32>
    %29 = vector.extract_strided_slice %27 {offsets = [0, 32], sizes = [8, 4], strides = [1, 1]} : vector<8x44xf32> to vector<8x4xf32>
    %cst_21 = arith.constant -6.000000e+00 : f32
    %cst_22 = arith.constant 6.000000e+00 : f32
    %30 = vector.broadcast %cst_21 : f32 to vector<8x4xf32>
    %31 = arith.maximumf %30, %29 : vector<8x4xf32>
    %32 = vector.broadcast %cst_22 : f32 to vector<8x4xf32>
    %33 = arith.minimumf %32, %31 : vector<8x4xf32>
    %34 = vector.extract_strided_slice %27 {offsets = [0, 36], sizes = [8, 4], strides = [1, 1]} : vector<8x44xf32> to vector<8x4xf32>
    %cst_23 = arith.constant -6.000000e+00 : f32
    %cst_24 = arith.constant 6.000000e+00 : f32
    %35 = vector.broadcast %cst_23 : f32 to vector<8x4xf32>
    %36 = arith.maximumf %35, %34 : vector<8x4xf32>
    %37 = vector.broadcast %cst_24 : f32 to vector<8x4xf32>
    %38 = arith.minimumf %37, %36 : vector<8x4xf32>
    %39 = vector.extract_strided_slice %27 {offsets = [0, 40], sizes = [8, 4], strides = [1, 1]} : vector<8x44xf32> to vector<8x4xf32>
    %c0_25 = arith.constant 0 : index
    %c0_26 = arith.constant 0 : index
    %40 = vector.load %arg9[%c0_25, %c0_26] : memref<32x4xf32, #tpu.memory_space<vmem>>, vector<32x4xf32>
    %c0_27 = arith.constant 0 : index
    %c0_28 = arith.constant 0 : index
    %41 = vector.load %arg10[%c0_27, %c0_28] : memref<4x32xf32, #tpu.memory_space<vmem>>, vector<4x32xf32>
    %c0_29 = arith.constant 0 : index
    %c0_30 = arith.constant 0 : index
    %42 = vector.load %arg11[%c0_29, %c0_30] : memref<8x64xf32, #tpu.memory_space<vmem>>, vector<8x64xf32>
    %cst_31 = arith.constant dense<0.000000e+00> : vector<8x32xf32>
    %43 = tpu.matmul %39, %41, %cst_31 {dimension_numbers = #tpu.dot_dimension_numbers<[1], [0], [0], [1], [0, 0, 1, 1], [], []>} : vector<8x4xf32>, vector<4x32xf32>, vector<8x32xf32> -> vector<8x32xf32>
    %44 = arith.subf %28, %43 : vector<8x32xf32>
    %45 = arith.mulf %44, %44 : vector<8x32xf32>
    %cst_32 = arith.constant dense<0.000000e+00> : vector<8x4xf32>
    %46 = tpu.matmul %45, %40, %cst_32 {dimension_numbers = #tpu.dot_dimension_numbers<[1], [0], [0], [1], [0, 0, 1, 1], [], []>} : vector<8x32xf32>, vector<32x4xf32>, vector<8x4xf32> -> vector<8x4xf32>
    %cst_33 = arith.constant 1.250000e-01 : f32
    %47 = vector.broadcast %cst_33 : f32 to vector<8x4xf32>
    %48 = arith.mulf %46, %47 : vector<8x4xf32>
    %cst_34 = arith.constant 9.99999974E-6 : f32
    %49 = vector.broadcast %cst_34 : f32 to vector<8x4xf32>
    %50 = arith.addf %48, %49 : vector<8x4xf32>
    %51 = math.rsqrt %50 : vector<8x4xf32>
    %52 = arith.subf %38, %33 : vector<8x4xf32>
    %cst_35 = arith.constant 0.000000e+00 : f32
    %53 = vector.broadcast %cst_35 : f32 to vector<8x4xf32>
    %54 = arith.subf %53, %52 : vector<8x4xf32>
    %cst_36 = arith.constant 0.000000e+00 : f32
    %55 = vector.broadcast %cst_36 : f32 to vector<8x4xf32>
    %56 = arith.maximumf %54, %55 : vector<8x4xf32>
    %57 = math.absf %54 : vector<8x4xf32>
    %cst_37 = arith.constant 0.000000e+00 : f32
    %58 = vector.broadcast %cst_37 : f32 to vector<8x4xf32>
    %59 = arith.subf %58, %57 : vector<8x4xf32>
    %60 = math.exp %59 : vector<8x4xf32>
    %cst_38 = arith.constant 1.000000e+00 : f32
    %61 = vector.broadcast %cst_38 : f32 to vector<8x4xf32>
    %62 = arith.addf %61, %60 : vector<8x4xf32>
    %63 = math.log %62 : vector<8x4xf32>
    %64 = arith.addf %56, %63 : vector<8x4xf32>
    %cst_39 = arith.constant 0.000000e+00 : f32
    %65 = vector.broadcast %cst_39 : f32 to vector<8x4xf32>
    %66 = arith.subf %65, %64 : vector<8x4xf32>
    %67 = math.exp %66 : vector<8x4xf32>
    %cst_40 = arith.constant 1.000000e+00 : f32
    %68 = vector.broadcast %cst_40 : f32 to vector<8x4xf32>
    %69 = arith.subf %68, %67 : vector<8x4xf32>
    %cst_41 = arith.constant -2.000000e+00 : f32
    %70 = vector.broadcast %cst_41 : f32 to vector<8x4xf32>
    %71 = arith.mulf %70, %64 : vector<8x4xf32>
    %72 = arith.mulf %51, %69 : vector<8x4xf32>
    %73 = tpu.concatenate %72, %67 in 1 : vector<8x4xf32>, vector<8x4xf32> -> vector<8x8xf32>
    %cst_42 = arith.constant dense<0.000000e+00> : vector<8x64xf32>
    %74 = tpu.matmul %73, %42, %cst_42 {dimension_numbers = #tpu.dot_dimension_numbers<[1], [0], [0], [1], [0, 0, 1, 1], [], []>} : vector<8x8xf32>, vector<8x64xf32>, vector<8x64xf32> -> vector<8x64xf32>
    %75 = vector.extract_strided_slice %74 {offsets = [0, 0], sizes = [8, 32], strides = [1, 1]} : vector<8x64xf32> to vector<8x32xf32>
    %76 = arith.mulf %44, %75 : vector<8x32xf32>
    %c0_43 = arith.constant 0 : index
    %c0_44 = arith.constant 0 : index
    %77 = vector.load %arg2[%c0_43, %c0_44] : memref<8x32xf32, #tpu.memory_space<vmem>>, vector<8x32xf32>
    %78 = vector.extract_strided_slice %74 {offsets = [0, 32], sizes = [8, 32], strides = [1, 1]} : vector<8x64xf32> to vector<8x32xf32>
    %79 = arith.mulf %77, %78 : vector<8x32xf32>
    %80 = arith.addf %76, %79 : vector<8x32xf32>
    %81 = arith.mulf %76, %76 : vector<8x32xf32>
    %cst_45 = arith.constant dense<0.000000e+00> : vector<8x4xf32>
    %82 = tpu.matmul %81, %40, %cst_45 {dimension_numbers = #tpu.dot_dimension_numbers<[1], [0], [0], [1], [0, 0, 1, 1], [], []>} : vector<8x32xf32>, vector<32x4xf32>, vector<8x4xf32> -> vector<8x4xf32>
    %83 = arith.mulf %67, %67 : vector<8x4xf32>
    %cst_46 = arith.constant 1.000000e+00 : f32
    %84 = vector.broadcast %cst_46 : f32 to vector<8x4xf32>
    %85 = arith.subf %83, %84 : vector<8x4xf32>
    %86 = arith.subf %85, %71 : vector<8x4xf32>
    %cst_47 = arith.constant 8.000000e+00 : f32
    %87 = vector.broadcast %cst_47 : f32 to vector<8x4xf32>
    %88 = arith.mulf %87, %86 : vector<8x4xf32>
    %89 = arith.addf %82, %88 : vector<8x4xf32>
    %cst_48 = arith.constant 5.000000e-01 : f32
    %90 = vector.broadcast %cst_48 : f32 to vector<8x4xf32>
    %91 = arith.mulf %90, %89 : vector<8x4xf32>
    %cst_49 = arith.constant 0.000000e+00 : f32
    %92 = vector.broadcast %cst_49 : f32 to vector<8x92xf32>
    %93 = tpu.concatenate %80, %91, %92 in 1 : vector<8x32xf32>, vector<8x4xf32>, vector<8x92xf32> -> vector<8x128xf32>
    %c0_50 = arith.constant 0 : index
    %c0_51 = arith.constant 0 : index
    %94 = vector.load %arg12[%c0_50, %c0_51] : memref<8x128xf32, #tpu.memory_space<vmem>>, vector<8x128xf32>
    tpu.vector_store %arg12[%c0_50, %c0_51], %93 {strides = array<i32>} : memref<8x128xf32, #tpu.memory_space<vmem>>, vector<8x128xf32>,
    return
  }
  func.func @transform_0(%arg0: i32) -> (i32, i32) {
    %c0_i32 = arith.constant 0 : i32
    %c0_i32_0 = arith.constant 0 : i32
    return %arg0, %c0_i32 : i32, i32
  }
  func.func @transform_1(%arg0: i32) -> (i32, i32) {
    %c0_i32 = arith.constant 0 : i32
    %c0_i32_0 = arith.constant 0 : i32
    return %arg0, %c0_i32 : i32, i32
  }
  func.func @transform_2(%arg0: i32) -> (i32, i32) {
    %c0_i32 = arith.constant 0 : i32
    %c0_i32_0 = arith.constant 0 : i32
    %c0_i32_1 = arith.constant 0 : i32
    return %c0_i32, %c0_i32_0 : i32, i32
  }
  func.func @transform_3(%arg0: i32) -> (i32, i32) {
    %c0_i32 = arith.constant 0 : i32
    %c0_i32_0 = arith.constant 0 : i32
    %c0_i32_1 = arith.constant 0 : i32
    return %c0_i32, %c0_i32_0 : i32, i32
  }
  func.func @transform_4(%arg0: i32) -> (i32, i32, i32) {
    %c0_i32 = arith.constant 0 : i32
    %c0_i32_0 = arith.constant 0 : i32
    %c0_i32_1 = arith.constant 0 : i32
    %c0_i32_2 = arith.constant 0 : i32
    return %c0_i32, %c0_i32_0, %c0_i32_1 : i32, i32, i32
  }
  func.func @transform_5(%arg0: i32) -> (i32, i32, i32) {
    %c0_i32 = arith.constant 0 : i32
    %c0_i32_0 = arith.constant 0 : i32
    %c0_i32_1 = arith.constant 0 : i32
    %c0_i32_2 = arith.constant 0 : i32
    return %c0_i32, %c0_i32_0, %c0_i32_1 : i32, i32, i32
  }
  func.func @transform_6(%arg0: i32) -> (i32, i32) {
    %c0_i32 = arith.constant 0 : i32
    %c0_i32_0 = arith.constant 0 : i32
    %c0_i32_1 = arith.constant 0 : i32
    return %c0_i32, %c0_i32_0 : i32, i32
  }
  func.func @transform_7(%arg0: i32) -> (i32, i32) {
    %c0_i32 = arith.constant 0 : i32
    %c0_i32_0 = arith.constant 0 : i32
    %c0_i32_1 = arith.constant 0 : i32
    return %c0_i32, %c0_i32_0 : i32, i32
  }
  func.func @transform_8(%arg0: i32) -> (i32, i32) {
    %c0_i32 = arith.constant 0 : i32
    %c0_i32_0 = arith.constant 0 : i32
    %c0_i32_1 = arith.constant 0 : i32
    return %c0_i32, %c0_i32_0 : i32, i32
  }
  func.func @transform_9(%arg0: i32) -> (i32, i32) {
    %c0_i32 = arith.constant 0 : i32
    %c0_i32_0 = arith.constant 0 : i32
    %c0_i32_1 = arith.constant 0 : i32
    return %c0_i32, %c0_i32_0 : i32, i32
  }
  func.func @transform_10(%arg0: i32) -> (i32, i32) {
    %c0_i32 = arith.constant 0 : i32
    %c0_i32_0 = arith.constant 0 : i32
    %c0_i32_1 = arith.constant 0 : i32
    return %c0_i32, %c0_i32_0 : i32, i32
  }
  func.func @transform_11(%arg0: i32) -> (i32, i32) {
    %c0_i32 = arith.constant 0 : i32
    %c0_i32_0 = arith.constant 0 : i32
    return %arg0, %c0_i32 : i32, i32
  }
}

</mosaic_0001>

<llo_original>
// kernel: tpu_custom_call.1
$region0: #{tpu_custom_call.1}
  #allocation0 [shape = 'u32[]', space=smem, size = 0x4, offset = 0x4, fixed_abs, tag = 'smem constant byte address 0x4 - core index']
  #allocation1 [shape = 'u32[144,128]{1,0:T(1,128)}', space=vmem, size = 0x12000, scoped, tag = 'internal scratch']
  %s0 = inlined_call_operand.vmem [shape: f32[8,36], index: 0, kind: input, shape index: {}]
  %s1 = inlined_call_operand.vmem [shape: f32[8,32], index: 1, kind: input, shape index: {}]
  %s2 = inlined_call_operand.vmem [shape: f32[36,128], index: 2, kind: input, shape index: {}]
  %s3 = inlined_call_operand.vmem [shape: f32[1,128], index: 3, kind: input, shape index: {}]
  %s4 = inlined_call_operand.vmem [shape: f32[1,128,128], index: 4, kind: input, shape index: {}]
  %s5 = inlined_call_operand.vmem [shape: f32[1,1,128], index: 5, kind: input, shape index: {}]
  %s6 = inlined_call_operand.vmem [shape: f32[128,44], index: 6, kind: input, shape index: {}]
  %s7 = inlined_call_operand.hbm [shape: f32[1,44], index: 7, kind: input, shape index: {}]
  %s8 = inlined_call_operand.vmem [shape: f32[32,4], index: 8, kind: input, shape index: {}]
  %s9 = inlined_call_operand.vmem [shape: f32[4,32], index: 9, kind: input, shape index: {}]
  %s10 = inlined_call_operand.vmem [shape: f32[8,64], index: 10, kind: input, shape index: {}]
  %s11 = inlined_call_operand.hbm [shape: f32[8,128], index: 11, kind: output, shape index: {}]
  %s12 = sld [smem:[#allocation0]]
  $region58: #{tpu_custom_call.1} parent=0
    _
  %s14 = ssub.s32 1, %s12
  %s15 = scalar_select 0, %s14, %s12
  $region1: #{tpu_custom_call.1} parent=0
    #allocation2 [shape = 'u8[512]{0}', space=vmem, size = 0x400, scoped, tag = 'input window, operand 7, single buffered']
    #allocation3 [shape = 's32[1]{0}', space=sflag, size = 0x4, scoped, tag = 'scoped memory for tpu_custom_call.1']
    #allocation4 [shape = 's32[1]{0}', space=sflag, size = 0x4, scoped, tag = 'scoped memory for tpu_custom_call.1']
    #allocation5 [shape = 'u8[4096]{0}', space=vmem, size = 0x1000, scoped, tag = 'output window, operand 0, single buffered']
    %16 = vsyncpa [#allocation3], 0
    %17 = vsyncpa [#allocation4], 0
    // Predicated region
    $region2: #{tpu_custom_call.1} parent=1 // pred_check
      _
    $region3: #{tpu_custom_call.1} parent=1 // pred_check_branch
      %19 = sbr.rel (0) target = $region5
    $region4: #{tpu_custom_call.1} parent=1 // pred_region
      _
    $region5: #{tpu_custom_call.1} parent=1 // pred_fallthru
      _
    // Predicated region
    $region6: #{tpu_custom_call.1} parent=1 // pred_check
      _
    $region7: #{tpu_custom_call.1} parent=1 // pred_check_branch
      %21 = sbr.rel (0) target = $region9
    $region8: #{tpu_custom_call.1} parent=1 // pred_region
      _
    $region9: #{tpu_custom_call.1} parent=1 // pred_fallthru
      _
    // Predicated region
    $region10: #{tpu_custom_call.1} parent=1 // pred_check
      _
    $region11: #{tpu_custom_call.1} parent=1 // pred_check_branch
      %23 = sbr.rel (0) target = $region13
    $region12: #{tpu_custom_call.1} parent=1 // pred_region
      _
    $region13: #{tpu_custom_call.1} parent=1 // pred_fallthru
      _
    // Predicated region
    $region14: #{tpu_custom_call.1} parent=1 // pred_check
      _
    $region15: #{tpu_custom_call.1} parent=1 // pred_check_branch
      %25 = sbr.rel (0) target = $region17
    $region16: #{tpu_custom_call.1} parent=1 // pred_region
      _
    $region17: #{tpu_custom_call.1} parent=1 // pred_fallthru
      _
    // Predicated region
    $region18: #{tpu_custom_call.1} parent=1 // pred_check
      _
    $region19: #{tpu_custom_call.1} parent=1 // pred_check_branch
      %27 = sbr.rel (0) target = $region21
    $region20: #{tpu_custom_call.1} parent=1 // pred_region
      _
    $region21: #{tpu_custom_call.1} parent=1 // pred_fallthru
      _
    // Predicated region
    $region22: #{tpu_custom_call.1} parent=1 // pred_check
      _
    $region23: #{tpu_custom_call.1} parent=1 // pred_check_branch
      %29 = sbr.rel (0) target = $region25
    $region24: #{tpu_custom_call.1} parent=1 // pred_region
      _
    $region25: #{tpu_custom_call.1} parent=1 // pred_fallthru
      _
    // Predicated region
    $region26: #{tpu_custom_call.1} parent=1 // pred_check
      _
    $region27: #{tpu_custom_call.1} parent=1 // pred_check_branch
      %31 = sbr.rel (0) target = $region29
    $region28: #{tpu_custom_call.1} parent=1 // pred_region
      _
    $region29: #{tpu_custom_call.1} parent=1 // pred_fallthru
      _
    // Predicated region
    $region30: #{tpu_custom_call.1} parent=1 // pred_check
      _
    $region31: #{tpu_custom_call.1} parent=1 // pred_check_branch
      %33 = sbr.rel (0) target = $region33
    $region32: #{tpu_custom_call.1} parent=1 // pred_region
      %s35 = ssub.s32 16, 16
      %36 = vsyncadd [#allocation3], %s35
      %s38 = sshll.u32 [#allocation2], 4
      %s39 = int_to_ptr.vmem [resolvable:$true] %s38
      %41 = dma.hbm_to_vmem [thread:$0]  %s7, 16, %s39, [#allocation3]
    $region33: #{tpu_custom_call.1} parent=1 // pred_fallthru
      _
    // Predicated region
    $region34: #{tpu_custom_call.1} parent=1 // pred_check
      _
    $region35: #{tpu_custom_call.1} parent=1 // pred_check_branch
      %43 = sbr.rel (0) target = $region37
    $region36: #{tpu_custom_call.1} parent=1 // pred_region
      _
    $region37: #{tpu_custom_call.1} parent=1 // pred_fallthru
      _
    // Predicated region
    $region38: #{tpu_custom_call.1} parent=1 // pred_check
      _
    $region39: #{tpu_custom_call.1} parent=1 // pred_check_branch
      %45 = sbr.rel (0) target = $region41
    $region40: #{tpu_custom_call.1} parent=1 // pred_region
      _
    $region41: #{tpu_custom_call.1} parent=1 // pred_fallthru
      _
    // Predicated region
    $region42: #{tpu_custom_call.1} parent=1 // pred_check
      _
    $region43: #{tpu_custom_call.1} parent=1 // pred_check_branch
      %47 = sbr.rel (0) target = $region45
    $region44: #{tpu_custom_call.1} parent=1 // pred_region
      _
    $region45: #{tpu_custom_call.1} parent=1 // pred_fallthru
      _
    // Predicated region
    $region46: #{tpu_custom_call.1} parent=1 // pred_check
      _
    $region47: #{tpu_custom_call.1} parent=1 // pred_check_branch
      %49 = sbr.rel (0) target = $region49
    $region48: #{tpu_custom_call.1} parent=1 // pred_region
      %50 = dma.done [#allocation3], 16
    $region49: #{tpu_custom_call.1} parent=1 // pred_fallthru
      _
    %v51 = vld [vmem:[%s0] sm:$0xff]
    %v52 = vld [vmem:[%s2] sm:$0xff]
    %v53 = vld [vmem:[%s2 + $0x8] sm:$0xff]
    %v54 = vld [vmem:[%s2 + $0x10] sm:$0xff]
    %v55 = vld [vmem:[%s2 + $0x18] sm:$0xff]
    %v56 = vld [vmem:[%s2 + $0x20] sm:$0xf]
    %v57 = vld [vmem:[%s3] sm:$0x1]
    %v59 = vlaneseq
    %v60 = vshrl.u32 %v59, 7
    %v61 = vsub.s32 0, %v60
    %v62 = vrot.slane %v57, %v61
    %vm64 = vcmask 293888
    %v66 = vsel %vm64, %v51, 0
    %vm68 = vcmask 1043456
    %v70 = vsel %vm68, %v56, 0
    %72 = vmatprep.subr.mxu0 0.0
    %73 = vmatpush1.msra.mxu0 %v52
    %74 = vmatprep.subr.mxu0 0.0
    %75 = vmatpush1.msra.mxu0 %v53
    %76 = vmatprep.subr.mxu0 0.0
    %77 = vmatpush1.msra.mxu0 %v54
    %78 = vmatprep.subr.mxu0 0.0
    %79 = vmatpush1.msra.mxu0 %v55
    %80 = vmatprep.subr.mxu0 0.0
    %81 = vmatpush1.msra.mxu0 %v70
    %82 = vmatprep.subr.mxu0 0.0
    %83 = vmatpush1.msra.mxu0 0.0
    %84 = vmatprep.subr.mxu0 0.0
    %85 = vmatpush1.msra.mxu0 0.0
    %86 = vmatprep.subr.mxu0 0.0
    %87 = vmatpush1.msra.mxu0 0.0
    %88 = vmatprep.subr.mxu0 0.0
    %89 = vmatpush1.msra.mxu0 0.0
    %90 = vmatprep.subr.mxu0 0.0
    %91 = vmatpush1.msra.mxu0 0.0
    %92 = vmatprep.subr.mxu0 0.0
    %93 = vmatpush1.msra.mxu0 0.0
    %94 = vmatprep.subr.mxu0 0.0
    %95 = vmatpush1.msra.mxu0 0.0
    %96 = vmatprep.subr.mxu0 0.0
    %97 = vmatpush1.msra.mxu0 0.0
    %98 = vmatprep.subr.mxu0 0.0
    %99 = vmatpush1.msra.mxu0 0.0
    %100 = vmatprep.subr.mxu0 0.0
    %101 = vmatpush1.msra.mxu0 0.0
    %102 = vmatprep.subr.mxu0 0.0
    %103 = vmatpush1.msra.mxu0 0.0
    %104 = vmatprep.subr.mxu0 0.0
    %105 = vmatpush1.msra.mxu0 0.0
    %106 = vmatprep.subr.mxu0 0.0
    %107 = vmatpush1.msra.mxu0 0.0
    %108 = vmatprep.subr.mxu0 0.0
    %109 = vmatpush1.msra.mxu0 0.0
    %110 = vmatprep.subr.mxu0 0.0
    %111 = vmatpush1.msra.mxu0 0.0
    %112 = vmatprep.subr.mxu0 0.0
    %113 = vmatpush1.msra.mxu0 0.0
    %114 = vmatprep.subr.mxu0 0.0
    %115 = vmatpush1.msra.mxu0 0.0
    %116 = vmatprep.subr.mxu0 0.0
    %117 = vmatpush1.msra.mxu0 0.0
    %118 = vmatprep.subr.mxu0 0.0
    %119 = vmatpush1.msra.mxu0 0.0
    %120 = vmatprep.subr.mxu0 0.0
    %121 = vmatpush1.msra.mxu0 0.0
    %122 = vmatprep.subr.mxu0 0.0
    %123 = vmatpush1.msra.mxu0 0.0
    %124 = vmatprep.subr.mxu0 0.0
    %125 = vmatpush1.msra.mxu0 0.0
    %126 = vmatprep.subr.mxu0 0.0
    %127 = vmatpush1.msra.mxu0 0.0
    %128 = vmatprep.subr.mxu0 0.0
    %129 = vmatpush1.msra.mxu0 0.0
    %130 = vmatprep.subr.mxu0 0.0
    %131 = vmatpush1.msra.mxu0 0.0
    %132 = vmatprep.subr.mxu0 0.0
    %133 = vmatpush1.msra.mxu0 0.0
    %134 = vmatprep.subr.mxu0 0.0
    %135 = vmatpush1.msra.mxu0 0.0
    %136 = vmatprep.mubr.f32.mxu0 0.0
    %137 = vmatmul.mubr.f32.gmra.mrb[0].mxu0 %v66
    %v138 = vpop.f32.mrb[0].mxu0
    %v139 = vadd.f32 %v62, %v138
    %v140 = vpop.f32.mrb[0].mxu0
    %141 = vdwg.mxu0
    %vm142 = vcmp.ge.f32.partialorder %v139, 0.0
    %v143 = vmul.f32 %v139, 0.01
    %v144 = vsel %vm142, %v139, %v143
    %v145 = vld [vmem:[%s4] sm:$0xff]
    %v146 = vld [vmem:[%s4 + $0x8] sm:$0xff]
    %v147 = vld [vmem:[%s4 + $0x10] sm:$0xff]
    %v148 = vld [vmem:[%s4 + $0x18] sm:$0xff]
    %v149 = vld [vmem:[%s4 + $0x20] sm:$0xff]
    %v150 = vld [vmem:[%s4 + $0x28] sm:$0xff]
    %v151 = vld [vmem:[%s4 + $0x30] sm:$0xff]
    %v152 = vld [vmem:[%s4 + $0x38] sm:$0xff]
    %v153 = vld [vmem:[%s4 + $0x40] sm:$0xff]
    %v154 = vld [vmem:[%s4 + $0x48] sm:$0xff]
    %v155 = vld [vmem:[%s4 + $0x50] sm:$0xff]
    %v156 = vld [vmem:[%s4 + $0x58] sm:$0xff]
    %v157 = vld [vmem:[%s4 + $0x60] sm:$0xff]
    %v158 = vld [vmem:[%s4 + $0x68] sm:$0xff]
    %v159 = vld [vmem:[%s4 + $0x70] sm:$0xff]
    %v160 = vld [vmem:[%s4 + $0x78] sm:$0xff]
    %v161 = vld [vmem:[%s5] sm:$0x1]
    %v163 = vlaneseq
    %v164 = vshrl.u32 %v163, 7
    %v165 = vsub.s32 0, %v164
    %v166 = vrot.slane %v161, %v165
    %168 = vmatprep.subr.mxu0 0.0
    %169 = vmatpush1.msra.mxu0 %v145
    %170 = vmatprep.subr.mxu0 0.0
    %171 = vmatpush1.msra.mxu0 %v146
    %172 = vmatprep.subr.mxu0 0.0
    %173 = vmatpush1.msra.mxu0 %v147
    %174 = vmatprep.subr.mxu0 0.0
    %175 = vmatpush1.msra.mxu0 %v148
    %176 = vmatprep.subr.mxu0 0.0
    %177 = vmatpush1.msra.mxu0 %v149
    %178 = vmatprep.subr.mxu0 0.0
    %179 = vmatpush1.msra.mxu0 %v150
    %180 = vmatprep.subr.mxu0 0.0
    %181 = vmatpush1.msra.mxu0 %v151
    %182 = vmatprep.subr.mxu0 0.0
    %183 = vmatpush1.msra.mxu0 %v152
    %184 = vmatprep.subr.mxu0 0.0
    %185 = vmatpush1.msra.mxu0 %v153
    %186 = vmatprep.subr.mxu0 0.0
    %187 = vmatpush1.msra.mxu0 %v154
    %188 = vmatprep.subr.mxu0 0.0
    %189 = vmatpush1.msra.mxu0 %v155
    %190 = vmatprep.subr.mxu0 0.0
    %191 = vmatpush1.msra.mxu0 %v156
    %192 = vmatprep.subr.mxu0 0.0
    %193 = vmatpush1.msra.mxu0 %v157
    %194 = vmatprep.subr.mxu0 0.0
    %195 = vmatpush1.msra.mxu0 %v158
    %196 = vmatprep.subr.mxu0 0.0
    %197 = vmatpush1.msra.mxu0 %v159
    %198 = vmatprep.subr.mxu0 0.0
    %199 = vmatpush1.msra.mxu0 %v160
    %200 = vmatprep.subr.mxu0 0.0
    %201 = vmatpush1.msra.mxu0 0.0
    %202 = vmatprep.subr.mxu0 0.0
    %203 = vmatpush1.msra.mxu0 0.0
    %204 = vmatprep.subr.mxu0 0.0
    %205 = vmatpush1.msra.mxu0 0.0
    %206 = vmatprep.subr.mxu0 0.0
    %207 = vmatpush1.msra.mxu0 0.0
    %208 = vmatprep.subr.mxu0 0.0
    %209 = vmatpush1.msra.mxu0 0.0
    %210 = vmatprep.subr.mxu0 0.0
    %211 = vmatpush1.msra.mxu0 0.0
    %212 = vmatprep.subr.mxu0 0.0
    %213 = vmatpush1.msra.mxu0 0.0
    %214 = vmatprep.subr.mxu0 0.0
    %215 = vmatpush1.msra.mxu0 0.0
    %216 = vmatprep.subr.mxu0 0.0
    %217 = vmatpush1.msra.mxu0 0.0
    %218 = vmatprep.subr.mxu0 0.0
    %219 = vmatpush1.msra.mxu0 0.0
    %220 = vmatprep.subr.mxu0 0.0
    %221 = vmatpush1.msra.mxu0 0.0
    %222 = vmatprep.subr.mxu0 0.0
    %223 = vmatpush1.msra.mxu0 0.0
    %224 = vmatprep.subr.mxu0 0.0
    %225 = vmatpush1.msra.mxu0 0.0
    %226 = vmatprep.subr.mxu0 0.0
    %227 = vmatpush1.msra.mxu0 0.0
    %228 = vmatprep.subr.mxu0 0.0
    %229 = vmatpush1.msra.mxu0 0.0
    %230 = vmatprep.subr.mxu0 0.0
    %231 = vmatpush1.msra.mxu0 0.0
    %232 = vmatprep.mubr.f32.mxu0 0.0
    %233 = vmatmul.mubr.f32.gmra.mrb[0].mxu0 %v144
    %v234 = vpop.f32.mrb[0].mxu0
    %v235 = vadd.f32 %v166, %v234
    %v236 = vpop.f32.mrb[0].mxu0
    %237 = vdwg.mxu0
    %vm238 = vcmp.ge.f32.partialorder %v235, 0.0
    %v239 = vmul.f32 %v235, 0.01
    %v240 = vsel %vm238, %v235, %v239
    %v241 = vld [vmem:[%s6] sm:$0xff]
    %v242 = vld [vmem:[%s6 + $0x8] sm:$0xff]
    %v243 = vld [vmem:[%s6 + $0x10] sm:$0xff]
    %v244 = vld [vmem:[%s6 + $0x18] sm:$0xff]
    %v245 = vld [vmem:[%s6 + $0x20] sm:$0xff]
    %v246 = vld [vmem:[%s6 + $0x28] sm:$0xff]
    %v247 = vld [vmem:[%s6 + $0x30] sm:$0xff]
    %v248 = vld [vmem:[%s6 + $0x38] sm:$0xff]
    %v249 = vld [vmem:[%s6 + $0x40] sm:$0xff]
    %v250 = vld [vmem:[%s6 + $0x48] sm:$0xff]
    %v251 = vld [vmem:[%s6 + $0x50] sm:$0xff]
    %v252 = vld [vmem:[%s6 + $0x58] sm:$0xff]
    %v253 = vld [vmem:[%s6 + $0x60] sm:$0xff]
    %v254 = vld [vmem:[%s6 + $0x68] sm:$0xff]
    %v255 = vld [vmem:[%s6 + $0x70] sm:$0xff]
    %v256 = vld [vmem:[%s6 + $0x78] sm:$0xff]
    %v257 = vld [vmem:[#allocation2] sm:$0x1]
    %v259 = vlaneseq
    %v260 = vshrl.u32 %v259, 7
    %v261 = vsub.s32 0, %v260
    %v262 = vrot.slane %v257, %v261
    %264 = vmatprep.subr.mxu0 0.0
    %265 = vmatpush1.msra.mxu0 %v241
    %266 = vmatprep.subr.mxu0 0.0
    %267 = vmatpush1.msra.mxu0 %v242
    %268 = vmatprep.subr.mxu0 0.0
    %269 = vmatpush1.msra.mxu0 %v243
    %270 = vmatprep.subr.mxu0 0.0
    %271 = vmatpush1.msra.mxu0 %v244
    %272 = vmatprep.subr.mxu0 0.0
    %273 = vmatpush1.msra.mxu0 %v245
    %274 = vmatprep.subr.mxu0 0.0
    %275 = vmatpush1.msra.mxu0 %v246
    %276 = vmatprep.subr.mxu0 0.0
    %277 = vmatpush1.msra.mxu0 %v247
    %278 = vmatprep.subr.mxu0 0.0
    %279 = vmatpush1.msra.mxu0 %v248
    %280 = vmatprep.subr.mxu0 0.0
    %281 = vmatpush1.msra.mxu0 %v249
    %282 = vmatprep.subr.mxu0 0.0
    %283 = vmatpush1.msra.mxu0 %v250
    %284 = vmatprep.subr.mxu0 0.0
    %285 = vmatpush1.msra.mxu0 %v251
    %286 = vmatprep.subr.mxu0 0.0
    %287 = vmatpush1.msra.mxu0 %v252
    %288 = vmatprep.subr.mxu0 0.0
    %289 = vmatpush1.msra.mxu0 %v253
    %290 = vmatprep.subr.mxu0 0.0
    %291 = vmatpush1.msra.mxu0 %v254
    %292 = vmatprep.subr.mxu0 0.0
    %293 = vmatpush1.msra.mxu0 %v255
    %294 = vmatprep.subr.mxu0 0.0
    %295 = vmatpush1.msra.mxu0 %v256
    %296 = vmatprep.subr.mxu0 0.0
    %297 = vmatpush1.msra.mxu0 0.0
    %298 = vmatprep.subr.mxu0 0.0
    %299 = vmatpush1.msra.mxu0 0.0
    %300 = vmatprep.subr.mxu0 0.0
    %301 = vmatpush1.msra.mxu0 0.0
    %302 = vmatprep.subr.mxu0 0.0
    %303 = vmatpush1.msra.mxu0 0.0
    %304 = vmatprep.subr.mxu0 0.0
    %305 = vmatpush1.msra.mxu0 0.0
    %306 = vmatprep.subr.mxu0 0.0
    %307 = vmatpush1.msra.mxu0 0.0
    %308 = vmatprep.subr.mxu0 0.0
    %309 = vmatpush1.msra.mxu0 0.0
    %310 = vmatprep.subr.mxu0 0.0
    %311 = vmatpush1.msra.mxu0 0.0
    %312 = vmatprep.subr.mxu0 0.0
    %313 = vmatpush1.msra.mxu0 0.0
    %314 = vmatprep.subr.mxu0 0.0
    %315 = vmatpush1.msra.mxu0 0.0
    %316 = vmatprep.subr.mxu0 0.0
    %317 = vmatpush1.msra.mxu0 0.0
    %318 = vmatprep.subr.mxu0 0.0
    %319 = vmatpush1.msra.mxu0 0.0
    %320 = vmatprep.subr.mxu0 0.0
    %321 = vmatpush1.msra.mxu0 0.0
    %322 = vmatprep.subr.mxu0 0.0
    %323 = vmatpush1.msra.mxu0 0.0
    %324 = vmatprep.subr.mxu0 0.0
    %325 = vmatpush1.msra.mxu0 0.0
    %326 = vmatprep.subr.mxu0 0.0
    %327 = vmatpush1.msra.mxu0 0.0
    %328 = vmatprep.mubr.f32.mxu0 0.0
    %329 = vmatmul.mubr.f32.gmra.mrb[0].mxu0 %v240
    %v330 = vpop.f32.mrb[0].mxu0
    %v331 = vadd.f32 %v262, %v330
    %v332 = vpop.f32.mrb[0].mxu0
    %333 = vdwg.mxu0
    %v334 = vmax.f32 %v331, -6.0
    %v335 = vmin.f32 %v334, 6.0
    %v336 = vld [vmem:[%s8] sm:$0xff]
    %v337 = vld [vmem:[%s8 + $0x8] sm:$0xff]
    %v338 = vld [vmem:[%s8 + $0x10] sm:$0xff]
    %v339 = vld [vmem:[%s8 + $0x18] sm:$0xff]
    %v340 = vld [vmem:[%s9] sm:$0xf]
    %v341 = vld [vmem:[%s10] sm:$0xff]
    %343 = vrot.lane.b32.xlu0 %v331, 88
    %v344 = vpop.permute.xlu0 %343
    %vm345 = vcmask 31744
    %v346 = vsel %vm345, %v344, 0
    %v349 = vsel %vm68, %v340, 0
    %351 = vmatprep.subr.mxu0 0.0
    %352 = vmatpush1.msra.mxu0 %v349
    %353 = vmatprep.subr.mxu0 0.0
    %354 = vmatpush1.msra.mxu0 0.0
    %355 = vmatprep.subr.mxu0 0.0
    %356 = vmatpush1.msra.mxu0 0.0
    %357 = vmatprep.subr.mxu0 0.0
    %358 = vmatpush1.msra.mxu0 0.0
    %359 = vmatprep.subr.mxu0 0.0
    %360 = vmatpush1.msra.mxu0 0.0
    %361 = vmatprep.subr.mxu0 0.0
    %362 = vmatpush1.msra.mxu0 0.0
    %363 = vmatprep.subr.mxu0 0.0
    %364 = vmatpush1.msra.mxu0 0.0
    %365 = vmatprep.subr.mxu0 0.0
    %366 = vmatpush1.msra.mxu0 0.0
    %367 = vmatprep.subr.mxu0 0.0
    %368 = vmatpush1.msra.mxu0 0.0
    %369 = vmatprep.subr.mxu0 0.0
    %370 = vmatpush1.msra.mxu0 0.0
    %371 = vmatprep.subr.mxu0 0.0
    %372 = vmatpush1.msra.mxu0 0.0
    %373 = vmatprep.subr.mxu0 0.0
    %374 = vmatpush1.msra.mxu0 0.0
    %375 = vmatprep.subr.mxu0 0.0
    %376 = vmatpush1.msra.mxu0 0.0
    %377 = vmatprep.subr.mxu0 0.0
    %378 = vmatpush1.msra.mxu0 0.0
    %379 = vmatprep.subr.mxu0 0.0
    %380 = vmatpush1.msra.mxu0 0.0
    %381 = vmatprep.subr.mxu0 0.0
    %382 = vmatpush1.msra.mxu0 0.0
    %383 = vmatprep.subr.mxu0 0.0
    %384 = vmatpush1.msra.mxu0 0.0
    %385 = vmatprep.subr.mxu0 0.0
    %386 = vmatpush1.msra.mxu0 0.0
    %387 = vmatprep.subr.mxu0 0.0
    %388 = vmatpush1.msra.mxu0 0.0
    %389 = vmatprep.subr.mxu0 0.0
    %390 = vmatpush1.msra.mxu0 0.0
    %391 = vmatprep.subr.mxu0 0.0
    %392 = vmatpush1.msra.mxu0 0.0
    %393 = vmatprep.subr.mxu0 0.0
    %394 = vmatpush1.msra.mxu0 0.0
    %395 = vmatprep.subr.mxu0 0.0
    %396 = vmatpush1.msra.mxu0 0.0
    %397 = vmatprep.subr.mxu0 0.0
    %398 = vmatpush1.msra.mxu0 0.0
    %399 = vmatprep.subr.mxu0 0.0
    %400 = vmatpush1.msra.mxu0 0.0
    %401 = vmatprep.subr.mxu0 0.0
    %402 = vmatpush1.msra.mxu0 0.0
    %403 = vmatprep.subr.mxu0 0.0
    %404 = vmatpush1.msra.mxu0 0.0
    %405 = vmatprep.subr.mxu0 0.0
    %406 = vmatpush1.msra.mxu0 0.0
    %407 = vmatprep.subr.mxu0 0.0
    %408 = vmatpush1.msra.mxu0 0.0
    %409 = vmatprep.subr.mxu0 0.0
    %410 = vmatpush1.msra.mxu0 0.0
    %411 = vmatprep.subr.mxu0 0.0
    %412 = vmatpush1.msra.mxu0 0.0
    %413 = vmatprep.subr.mxu0 0.0
    %414 = vmatpush1.msra.mxu0 0.0
    %415 = vmatprep.mubr.f32.mxu0 0.0
    %416 = vmatmul.mubr.f32.gmra.mrb[0].mxu0 %v346
    %v417 = vpop.f32.mrb[0].mxu0
    %v418 = vadd.f32 0.0, %v417
    %v419 = vpop.f32.mrb[0].mxu0
    %420 = vdwg.mxu0
    %v421 = vsub.f32 %v331, %v418
    %v422 = vmul.f32 %v421, %v421
    %vm423 = vcmask 261120
    %v425 = vsel %vm423, %v422, 0
    %427 = vmatprep.subr.mxu0 0.0
    %428 = vmatpush1.msra.mxu0 %v336
    %429 = vmatprep.subr.mxu0 0.0
    %430 = vmatpush1.msra.mxu0 %v337
    %431 = vmatprep.subr.mxu0 0.0
    %432 = vmatpush1.msra.mxu0 %v338
    %433 = vmatprep.subr.mxu0 0.0
    %434 = vmatpush1.msra.mxu0 %v339
    %435 = vmatprep.subr.mxu0 0.0
    %436 = vmatpush1.msra.mxu0 0.0
    %437 = vmatprep.subr.mxu0 0.0
    %438 = vmatpush1.msra.mxu0 0.0
    %439 = vmatprep.subr.mxu0 0.0
    %440 = vmatpush1.msra.mxu0 0.0
    %441 = vmatprep.subr.mxu0 0.0
    %442 = vmatpush1.msra.mxu0 0.0
    %443 = vmatprep.subr.mxu0 0.0
    %444 = vmatpush1.msra.mxu0 0.0
    %445 = vmatprep.subr.mxu0 0.0
    %446 = vmatpush1.msra.mxu0 0.0
    %447 = vmatprep.subr.mxu0 0.0
    %448 = vmatpush1.msra.mxu0 0.0
    %449 = vmatprep.subr.mxu0 0.0
    %450 = vmatpush1.msra.mxu0 0.0
    %451 = vmatprep.subr.mxu0 0.0
    %452 = vmatpush1.msra.mxu0 0.0
    %453 = vmatprep.subr.mxu0 0.0
    %454 = vmatpush1.msra.mxu0 0.0
    %455 = vmatprep.subr.mxu0 0.0
    %456 = vmatpush1.msra.mxu0 0.0
    %457 = vmatprep.subr.mxu0 0.0
    %458 = vmatpush1.msra.mxu0 0.0
    %459 = vmatprep.subr.mxu0 0.0
    %460 = vmatpush1.msra.mxu0 0.0
    %461 = vmatprep.subr.mxu0 0.0
    %462 = vmatpush1.msra.mxu0 0.0
    %463 = vmatprep.subr.mxu0 0.0
    %464 = vmatpush1.msra.mxu0 0.0
    %465 = vmatprep.subr.mxu0 0.0
    %466 = vmatpush1.msra.mxu0 0.0
    %467 = vmatprep.subr.mxu0 0.0
    %468 = vmatpush1.msra.mxu0 0.0
    %469 = vmatprep.subr.mxu0 0.0
    %470 = vmatpush1.msra.mxu0 0.0
    %471 = vmatprep.subr.mxu0 0.0
    %472 = vmatpush1.msra.mxu0 0.0
    %473 = vmatprep.subr.mxu0 0.0
    %474 = vmatpush1.msra.mxu0 0.0
    %475 = vmatprep.subr.mxu0 0.0
    %476 = vmatpush1.msra.mxu0 0.0
    %477 = vmatprep.subr.mxu0 0.0
    %478 = vmatpush1.msra.mxu0 0.0
    %479 = vmatprep.subr.mxu0 0.0
    %480 = vmatpush1.msra.mxu0 0.0
    %481 = vmatprep.subr.mxu0 0.0
    %482 = vmatpush1.msra.mxu0 0.0
    %483 = vmatprep.subr.mxu0 0.0
    %484 = vmatpush1.msra.mxu0 0.0
    %485 = vmatprep.subr.mxu0 0.0
    %486 = vmatpush1.msra.mxu0 0.0
    %487 = vmatprep.subr.mxu0 0.0
    %488 = vmatpush1.msra.mxu0 0.0
    %489 = vmatprep.subr.mxu0 0.0
    %490 = vmatpush1.msra.mxu0 0.0
    %491 = vmatprep.mubr.f32.mxu0 0.0
    %492 = vmatmul.mubr.f32.gmra.mrb[0].mxu0 %v425
    %v493 = vpop.f32.mrb[0].mxu0
    %v494 = vadd.f32 0.0, %v493
    %v495 = vpop.f32.mrb[0].mxu0
    %496 = vdwg.mxu0
    %v497 = vmul.f32 %v494, 0.125
    %v498 = vadd.f32 %v497, 1e-05
    %v499 = vrsqrt.pop %v498
    %501 = vrot.lane.b32.xlu0 %v335, 4
    %v502 = vpop.permute.xlu0 %501
    %v504 = vsub.f32 %v335, %v502
    %v505 = vsub.f32 0.0, %v504
    %v506 = vmax.f32 %v505, 0.0
    %v507 = vand.u32 2147483647, %v505
    %v508 = vsub.f32 0.0, %v507
    %v509 = vmul.f32 %v508, 1.442695
    %v510 = vpow.pop %v509
    %v511 = vadd.f32 %v510, 1.0
    %v512 = vlog2.pop %v511
    %v513 = vmul.f32 %v512, 0.6931472
    %v514 = vadd.f32 %v506, %v513
    %v515 = vsub.f32 0.0, %v514
    %v516 = vmul.f32 %v515, 1.442695
    %v517 = vpow.pop %v516
    %v518 = vsub.f32 1.0, %v517
    %v519 = vmul.f32 %v514, -2.0
    %521 = vrot.lane.b32.xlu0 %v518, 92
    %v522 = vpop.permute.xlu0 %521
    %v524 = vmul.f32 %v499, %v522
    %526 = vrot.lane.b32.xlu0 %v517, 96
    %v527 = vpop.permute.xlu0 %526
    %v529 = vsel %vm345, %v524, %v527
    %vm530 = vcmask 64512
    %v532 = vsel %vm530, %v529, 0
    %534 = vmatprep.subr.mxu0 0.0
    %535 = vmatpush1.msra.mxu0 %v341
    %536 = vmatprep.subr.mxu0 0.0
    %537 = vmatpush1.msra.mxu0 0.0
    %538 = vmatprep.subr.mxu0 0.0
    %539 = vmatpush1.msra.mxu0 0.0
    %540 = vmatprep.subr.mxu0 0.0
    %541 = vmatpush1.msra.mxu0 0.0
    %542 = vmatprep.subr.mxu0 0.0
    %543 = vmatpush1.msra.mxu0 0.0
    %544 = vmatprep.subr.mxu0 0.0
    %545 = vmatpush1.msra.mxu0 0.0
    %546 = vmatprep.subr.mxu0 0.0
    %547 = vmatpush1.msra.mxu0 0.0
    %548 = vmatprep.subr.mxu0 0.0
    %549 = vmatpush1.msra.mxu0 0.0
    %550 = vmatprep.subr.mxu0 0.0
    %551 = vmatpush1.msra.mxu0 0.0
    %552 = vmatprep.subr.mxu0 0.0
    %553 = vmatpush1.msra.mxu0 0.0
    %554 = vmatprep.subr.mxu0 0.0
    %555 = vmatpush1.msra.mxu0 0.0
    %556 = vmatprep.subr.mxu0 0.0
    %557 = vmatpush1.msra.mxu0 0.0
    %558 = vmatprep.subr.mxu0 0.0
    %559 = vmatpush1.msra.mxu0 0.0
    %560 = vmatprep.subr.mxu0 0.0
    %561 = vmatpush1.msra.mxu0 0.0
    %562 = vmatprep.subr.mxu0 0.0
    %563 = vmatpush1.msra.mxu0 0.0
    %564 = vmatprep.subr.mxu0 0.0
    %565 = vmatpush1.msra.mxu0 0.0
    %566 = vmatprep.subr.mxu0 0.0
    %567 = vmatpush1.msra.mxu0 0.0
    %568 = vmatprep.subr.mxu0 0.0
    %569 = vmatpush1.msra.mxu0 0.0
    %570 = vmatprep.subr.mxu0 0.0
    %571 = vmatpush1.msra.mxu0 0.0
    %572 = vmatprep.subr.mxu0 0.0
    %573 = vmatpush1.msra.mxu0 0.0
    %574 = vmatprep.subr.mxu0 0.0
    %575 = vmatpush1.msra.mxu0 0.0
    %576 = vmatprep.subr.mxu0 0.0
    %577 = vmatpush1.msra.mxu0 0.0
    %578 = vmatprep.subr.mxu0 0.0
    %579 = vmatpush1.msra.mxu0 0.0
    %580 = vmatprep.subr.mxu0 0.0
    %581 = vmatpush1.msra.mxu0 0.0
    %582 = vmatprep.subr.mxu0 0.0
    %583 = vmatpush1.msra.mxu0 0.0
    %584 = vmatprep.subr.mxu0 0.0
    %585 = vmatpush1.msra.mxu0 0.0
    %586 = vmatprep.subr.mxu0 0.0
    %587 = vmatpush1.msra.mxu0 0.0
    %588 = vmatprep.subr.mxu0 0.0
    %589 = vmatpush1.msra.mxu0 0.0
    %590 = vmatprep.subr.mxu0 0.0
    %591 = vmatpush1.msra.mxu0 0.0
    %592 = vmatprep.subr.mxu0 0.0
    %593 = vmatpush1.msra.mxu0 0.0
    %594 = vmatprep.subr.mxu0 0.0
    %595 = vmatpush1.msra.mxu0 0.0
    %596 = vmatprep.subr.mxu0 0.0
    %597 = vmatpush1.msra.mxu0 0.0
    %598 = vmatprep.mubr.f32.mxu0 0.0
    %599 = vmatmul.mubr.f32.gmra.mrb[0].mxu0 %v532
    %v600 = vpop.f32.mrb[0].mxu0
    %v601 = vadd.f32 0.0, %v600
    %v602 = vpop.f32.mrb[0].mxu0
    %603 = vdwg.mxu0
    %v604 = vmul.f32 %v421, %v601
    %v605 = vld [vmem:[%s1] sm:$0xff]
    %607 = vrot.lane.b32.xlu0 %v601, 96
    %v608 = vpop.permute.xlu0 %607
    %v610 = vmul.f32 %v605, %v608
    %v611 = vadd.f32 %v604, %v610
    %v612 = vmul.f32 %v604, %v604
    %v613 = vmul.f32 %v517, %v517
    %v614 = vsub.f32 %v613, 1.0
    %v615 = vsub.f32 %v614, %v519
    %v616 = vmul.f32 %v615, 8.0
    %618 = vrot.lane.b32.xlu0 %v616, 92
    %v619 = vpop.permute.xlu0 %618
    %v622 = vsel %vm423, %v612, 0
    %624 = vmatprep.subr.mxu0 0.0
    %625 = vmatpush1.msra.mxu0 %v336
    %626 = vmatprep.subr.mxu0 0.0
    %627 = vmatpush1.msra.mxu0 %v337
    %628 = vmatprep.subr.mxu0 0.0
    %629 = vmatpush1.msra.mxu0 %v338
    %630 = vmatprep.subr.mxu0 0.0
    %631 = vmatpush1.msra.mxu0 %v339
    %632 = vmatprep.subr.mxu0 0.0
    %633 = vmatpush1.msra.mxu0 0.0
    %634 = vmatprep.subr.mxu0 0.0
    %635 = vmatpush1.msra.mxu0 0.0
    %636 = vmatprep.subr.mxu0 0.0
    %637 = vmatpush1.msra.mxu0 0.0
    %638 = vmatprep.subr.mxu0 0.0
    %639 = vmatpush1.msra.mxu0 0.0
    %640 = vmatprep.subr.mxu0 0.0
    %641 = vmatpush1.msra.mxu0 0.0
    %642 = vmatprep.subr.mxu0 0.0
    %643 = vmatpush1.msra.mxu0 0.0
    %644 = vmatprep.subr.mxu0 0.0
    %645 = vmatpush1.msra.mxu0 0.0
    %646 = vmatprep.subr.mxu0 0.0
    %647 = vmatpush1.msra.mxu0 0.0
    %648 = vmatprep.subr.mxu0 0.0
    %649 = vmatpush1.msra.mxu0 0.0
    %650 = vmatprep.subr.mxu0 0.0
    %651 = vmatpush1.msra.mxu0 0.0
    %652 = vmatprep.subr.mxu0 0.0
    %653 = vmatpush1.msra.mxu0 0.0
    %654 = vmatprep.subr.mxu0 0.0
    %655 = vmatpush1.msra.mxu0 0.0
    %656 = vmatprep.subr.mxu0 0.0
    %657 = vmatpush1.msra.mxu0 0.0
    %658 = vmatprep.subr.mxu0 0.0
    %659 = vmatpush1.msra.mxu0 0.0
    %660 = vmatprep.subr.mxu0 0.0
    %661 = vmatpush1.msra.mxu0 0.0
    %662 = vmatprep.subr.mxu0 0.0
    %663 = vmatpush1.msra.mxu0 0.0
    %664 = vmatprep.subr.mxu0 0.0
    %665 = vmatpush1.msra.mxu0 0.0
    %666 = vmatprep.subr.mxu0 0.0
    %667 = vmatpush1.msra.mxu0 0.0
    %668 = vmatprep.subr.mxu0 0.0
    %669 = vmatpush1.msra.mxu0 0.0
    %670 = vmatprep.subr.mxu0 0.0
    %671 = vmatpush1.msra.mxu0 0.0
    %672 = vmatprep.subr.mxu0 0.0
    %673 = vmatpush1.msra.mxu0 0.0
    %674 = vmatprep.subr.mxu0 0.0
    %675 = vmatpush1.msra.mxu0 0.0
    %676 = vmatprep.subr.mxu0 0.0
    %677 = vmatpush1.msra.mxu0 0.0
    %678 = vmatprep.subr.mxu0 0.0
    %679 = vmatpush1.msra.mxu0 0.0
    %680 = vmatprep.subr.mxu0 0.0
    %681 = vmatpush1.msra.mxu0 0.0
    %682 = vmatprep.subr.mxu0 0.0
    %683 = vmatpush1.msra.mxu0 0.0
    %684 = vmatprep.subr.mxu0 0.0
    %685 = vmatpush1.msra.mxu0 0.0
    %686 = vmatprep.subr.mxu0 0.0
    %687 = vmatpush1.msra.mxu0 0.0
    %688 = vmatprep.mubr.f32.mxu0 0.0
    %689 = vmatmul.mubr.f32.gmra.mrb[0].mxu0 %v622
    %v690 = vpop.f32.mrb[0].mxu0
    %v691 = vadd.f32 %v619, %v690
    %v692 = vpop.f32.mrb[0].mxu0
    %693 = vdwg.mxu0
    %v694 = vmul.f32 %v691, 0.5
    %696 = vrot.lane.b32.xlu0 %v694, 32
    %v697 = vpop.permute.xlu0 %696
    %v699 = vsel %vm423, %v611, %v697
    %v700 = vsel %vm64, %v699, 0.0
    %701 = vst [vmem:[#allocation5] sm:$0xff] %v700
    // Predicated region
    $region50: #{tpu_custom_call.1} parent=1 // pred_check
      _
    $region51: #{tpu_custom_call.1} parent=1 // pred_check_branch
      %703 = sbr.rel (0) target = $region53
    $region52: #{tpu_custom_call.1} parent=1 // pred_region
      %s705 = ssub.s32 128, 128
      %706 = vsyncadd [#allocation4], %s705
      %s708 = sshll.u32 [#allocation5], 4
      %s709 = int_to_ptr.vmem [resolvable:$true] %s708
      %711 = dma.vmem_to_hbm [thread:$0]  %s709, 128, %s11, [#allocation4]
    $region53: #{tpu_custom_call.1} parent=1 // pred_fallthru
      _
    // Predicated region
    $region54: #{tpu_custom_call.1} parent=1 // pred_check
      _
    $region55: #{tpu_custom_call.1} parent=1 // pred_check_branch
      %713 = sbr.rel (0) target = $region57
    $region56: #{tpu_custom_call.1} parent=1 // pred_region
      %714 = dma.done [#allocation4], 128
    $region57: #{tpu_custom_call.1} parent=1 // pred_fallthru
      _
    %715 = vsyncpa [#allocation3], 1
    %716 = vsyncpa [#allocation4], 1

// kernel: tpu_custom_call.1
$region0: #{tpu_custom_call.1}
  #allocation0 [shape = 'u32[]', space=smem, size = 0x4, offset = 0x4, fixed_abs, tag = 'smem constant byte address 0x4 - core index']
  #allocation1 [shape = 'u32[144,128]{1,0:T(1,128)}', space=vmem, size = 0x12000, scoped, tag = 'internal scratch']
  %s0 = inlined_call_operand.vmem [shape: f32[8,36], index: 0, kind: input, shape index: {}]
  %s1 = inlined_call_operand.vmem [shape: f32[8,32], index: 1, kind: input, shape index: {}]
  %s2 = inlined_call_operand.vmem [shape: f32[36,128], index: 2, kind: input, shape index: {}]
  %s3 = inlined_call_operand.vmem [shape: f32[1,128], index: 3, kind: input, shape index: {}]
  %s4 = inlined_call_operand.vmem [shape: f32[1,128,128], index: 4, kind: input, shape index: {}]
  %s5 = inlined_call_operand.vmem [shape: f32[1,1,128], index: 5, kind: input, shape index: {}]
  %s6 = inlined_call_operand.vmem [shape: f32[128,44], index: 6, kind: input, shape index: {}]
  %s7 = inlined_call_operand.hbm [shape: f32[1,44], index: 7, kind: input, shape index: {}]
  %s8 = inlined_call_operand.vmem [shape: f32[32,4], index: 8, kind: input, shape index: {}]
  %s9 = inlined_call_operand.vmem [shape: f32[4,32], index: 9, kind: input, shape index: {}]
  %s10 = inlined_call_operand.vmem [shape: f32[8,64], index: 10, kind: input, shape index: {}]
  %s11 = inlined_call_operand.hbm [shape: f32[8,128], index: 11, kind: output, shape index: {}]
  %s12 = sld [smem:[#allocation0]]
  $region58: #{tpu_custom_call.1} parent=0
    _
  %s14 = ssub.s32 1, %s12
  %s15 = scalar_select 0, %s14, %s12
  $region1: #{tpu_custom_call.1} parent=0
    #allocation2 [shape = 'u8[512]{0}', space=vmem, size = 0x400, scoped, tag = 'input window, operand 7, single buffered']
    #allocation3 [shape = 's32[1]{0}', space=sflag, size = 0x4, scoped, tag = 'scoped memory for tpu_custom_call.1']
    #allocation4 [shape = 's32[1]{0}', space=sflag, size = 0x4, scoped, tag = 'scoped memory for tpu_custom_call.1']
    #allocation5 [shape = 'u8[4096]{0}', space=vmem, size = 0x1000, scoped, tag = 'output window, operand 0, single buffered']
    %16 = vsyncpa [#allocation3], 0
    %17 = vsyncpa [#allocation4], 0
    // Predicated region
    $region2: #{tpu_custom_call.1} parent=1 // pred_check
      _
    $region3: #{tpu_custom_call.1} parent=1 // pred_check_branch
      %19 = sbr.rel (0) target = $region5
    $region4: #{tpu_custom_call.1} parent=1 // pred_region
      _
    $region5: #{tpu_custom_call.1} parent=1 // pred_fallthru
      _
    // Predicated region
    $region6: #{tpu_custom_call.1} parent=1 // pred_check
      _
    $region7: #{tpu_custom_call.1} parent=1 // pred_check_branch
      %21 = sbr.rel (0) target = $region9
    $region8: #{tpu_custom_call.1} parent=1 // pred_region
      _
    $region9: #{tpu_custom_call.1} parent=1 // pred_fallthru
      _
    // Predicated region
    $region10: #{tpu_custom_call.1} parent=1 // pred_check
      _
    $region11: #{tpu_custom_call.1} parent=1 // pred_check_branch
      %23 = sbr.rel (0) target = $region13
    $region12: #{tpu_custom_call.1} parent=1 // pred_region
      _
    $region13: #{tpu_custom_call.1} parent=1 // pred_fallthru
      _
    // Predicated region
    $region14: #{tpu_custom_call.1} parent=1 // pred_check
      _
    $region15: #{tpu_custom_call.1} parent=1 // pred_check_branch
      %25 = sbr.rel (0) target = $region17
    $region16: #{tpu_custom_call.1} parent=1 // pred_region
      _
    $region17: #{tpu_custom_call.1} parent=1 // pred_fallthru
      _
    // Predicated region
    $region18: #{tpu_custom_call.1} parent=1 // pred_check
      _
    $region19: #{tpu_custom_call.1} parent=1 // pred_check_branch
      %27 = sbr.rel (0) target = $region21
    $region20: #{tpu_custom_call.1} parent=1 // pred_region
      _
    $region21: #{tpu_custom_call.1} parent=1 // pred_fallthru
      _
    // Predicated region
    $region22: #{tpu_custom_call.1} parent=1 // pred_check
      _
    $region23: #{tpu_custom_call.1} parent=1 // pred_check_branch
      %29 = sbr.rel (0) target = $region25
    $region24: #{tpu_custom_call.1} parent=1 // pred_region
      _
    $region25: #{tpu_custom_call.1} parent=1 // pred_fallthru
      _
    // Predicated region
    $region26: #{tpu_custom_call.1} parent=1 // pred_check
      _
    $region27: #{tpu_custom_call.1} parent=1 // pred_check_branch
      %31 = sbr.rel (0) target = $region29
    $region28: #{tpu_custom_call.1} parent=1 // pred_region
      _
    $region29: #{tpu_custom_call.1} parent=1 // pred_fallthru
      _
    // Predicated region
    $region30: #{tpu_custom_call.1} parent=1 // pred_check
      _
    $region31: #{tpu_custom_call.1} parent=1 // pred_check_branch
      %33 = sbr.rel (0) target = $region33
    $region32: #{tpu_custom_call.1} parent=1 // pred_region
      %s35 = ssub.s32 16, 16
      %36 = vsyncadd [#allocation3], %s35
      %s38 = sshll.u32 [#allocation2], 4
      %s39 = int_to_ptr.vmem [resolvable:$true] %s38
      %41 = dma.hbm_to_vmem [thread:$0]  %s7, 16, %s39, [#allocation3]
    $region33: #{tpu_custom_call.1} parent=1 // pred_fallthru
      _
    // Predicated region
    $region34: #{tpu_custom_call.1} parent=1 // pred_check
      _
    $region35: #{tpu_custom_call.1} parent=1 // pred_check_branch
      %43 = sbr.rel (0) target = $region37
    $region36: #{tpu_custom_call.1} parent=1 // pred_region
      _
    $region37: #{tpu_custom_call.1} parent=1 // pred_fallthru
      _
    // Predicated region
    $region38: #{tpu_custom_call.1} parent=1 // pred_check
      _
    $region39: #{tpu_custom_call.1} parent=1 // pred_check_branch
      %45 = sbr.rel (0) target = $region41
    $region40: #{tpu_custom_call.1} parent=1 // pred_region
      _
    $region41: #{tpu_custom_call.1} parent=1 // pred_fallthru
      _
    // Predicated region
    $region42: #{tpu_custom_call.1} parent=1 // pred_check
      _
    $region43: #{tpu_custom_call.1} parent=1 // pred_check_branch
      %47 = sbr.rel (0) target = $region45
    $region44: #{tpu_custom_call.1} parent=1 // pred_region
      _
    $region45: #{tpu_custom_call.1} parent=1 // pred_fallthru
      _
    // Predicated region
    $region46: #{tpu_custom_call.1} parent=1 // pred_check
      _
    $region47: #{tpu_custom_call.1} parent=1 // pred_check_branch
      %49 = sbr.rel (0) target = $region49
    $region48: #{tpu_custom_call.1} parent=1 // pred_region
      %50 = dma.done [#allocation3], 16
    $region49: #{tpu_custom_call.1} parent=1 // pred_fallthru
      _
    %v51 = vld [vmem:[%s0] sm:$0xff]
    %v52 = vld [vmem:[%s2] sm:$0xff]
    %v53 = vld [vmem:[%s2 + $0x8] sm:$0xff]
    %v54 = vld [vmem:[%s2 + $0x10] sm:$0xff]
    %v55 = vld [vmem:[%s2 + $0x18] sm:$0xff]
    %v56 = vld [vmem:[%s2 + $0x20] sm:$0xf]
    %v57 = vld [vmem:[%s3] sm:$0x1]
    %v59 = vlaneseq
    %v60 = vshrl.u32 %v59, 7
    %v61 = vsub.s32 0, %v60
    %v62 = vrot.slane %v57, %v61
    %vm64 = vcmask 293888
    %v66 = vsel %vm64, %v51, 0
    %vm68 = vcmask 1043456
    %v70 = vsel %vm68, %v56, 0
    %72 = vmatprep.subr.mxu0 0.0
    %73 = vmatpush1.msra.mxu0 %v52
    %74 = vmatprep.subr.mxu0 0.0
    %75 = vmatpush1.msra.mxu0 %v53
    %76 = vmatprep.subr.mxu0 0.0
    %77 = vmatpush1.msra.mxu0 %v54
    %78 = vmatprep.subr.mxu0 0.0
    %79 = vmatpush1.msra.mxu0 %v55
    %80 = vmatprep.subr.mxu0 0.0
    %81 = vmatpush1.msra.mxu0 %v70
    %82 = vmatprep.subr.mxu0 0.0
    %83 = vmatpush1.msra.mxu0 0.0
    %84 = vmatprep.subr.mxu0 0.0
    %85 = vmatpush1.msra.mxu0 0.0
    %86 = vmatprep.subr.mxu0 0.0
    %87 = vmatpush1.msra.mxu0 0.0
    %88 = vmatprep.subr.mxu0 0.0
    %89 = vmatpush1.msra.mxu0 0.0
    %90 = vmatprep.subr.mxu0 0.0
    %91 = vmatpush1.msra.mxu0 0.0
    %92 = vmatprep.subr.mxu0 0.0
    %93 = vmatpush1.msra.mxu0 0.0
    %94 = vmatprep.subr.mxu0 0.0
    %95 = vmatpush1.msra.mxu0 0.0
    %96 = vmatprep.subr.mxu0 0.0
    %97 = vmatpush1.msra.mxu0 0.0
    %98 = vmatprep.subr.mxu0 0.0
    %99 = vmatpush1.msra.mxu0 0.0
    %100 = vmatprep.subr.mxu0 0.0
    %101 = vmatpush1.msra.mxu0 0.0
    %102 = vmatprep.subr.mxu0 0.0
    %103 = vmatpush1.msra.mxu0 0.0
    %104 = vmatprep.subr.mxu0 0.0
    %105 = vmatpush1.msra.mxu0 0.0
    %106 = vmatprep.subr.mxu0 0.0
    %107 = vmatpush1.msra.mxu0 0.0
    %108 = vmatprep.subr.mxu0 0.0
    %109 = vmatpush1.msra.mxu0 0.0
    %110 = vmatprep.subr.mxu0 0.0
    %111 = vmatpush1.msra.mxu0 0.0
    %112 = vmatprep.subr.mxu0 0.0
    %113 = vmatpush1.msra.mxu0 0.0
    %114 = vmatprep.subr.mxu0 0.0
    %115 = vmatpush1.msra.mxu0 0.0
    %116 = vmatprep.subr.mxu0 0.0
    %117 = vmatpush1.msra.mxu0 0.0
    %118 = vmatprep.subr.mxu0 0.0
    %119 = vmatpush1.msra.mxu0 0.0
    %120 = vmatprep.subr.mxu0 0.0
    %121 = vmatpush1.msra.mxu0 0.0
    %122 = vmatprep.subr.mxu0 0.0
    %123 = vmatpush1.msra.mxu0 0.0
    %124 = vmatprep.subr.mxu0 0.0
    %125 = vmatpush1.msra.mxu0 0.0
    %126 = vmatprep.subr.mxu0 0.0
    %127 = vmatpush1.msra.mxu0 0.0
    %128 = vmatprep.subr.mxu0 0.0
    %129 = vmatpush1.msra.mxu0 0.0
    %130 = vmatprep.subr.mxu0 0.0
    %131 = vmatpush1.msra.mxu0 0.0
    %132 = vmatprep.subr.mxu0 0.0
    %133 = vmatpush1.msra.mxu0 0.0
    %134 = vmatprep.subr.mxu0 0.0
    %135 = vmatpush1.msra.mxu0 0.0
    %136 = vmatprep.mubr.f32.mxu0 0.0
    %137 = vmatmul.mubr.f32.gmra.mrb[0].mxu0 %v66
    %v138 = vpop.f32.mrb[0].mxu0
    %v139 = vadd.f32 %v62, %v138
    %v140 = vpop.f32.mrb[0].mxu0
    %141 = vdwg.mxu0
    %vm142 = vcmp.ge.f32.partialorder %v139, 0.0
    %v143 = vmul.f32 %v139, 0.01
    %v144 = vsel %vm142, %v139, %v143
    %v145 = vld [vmem:[%s4] sm:$0xff]
    %v146 = vld [vmem:[%s4 + $0x8] sm:$0xff]
    %v147 = vld [vmem:[%s4 + $0x10] sm:$0xff]
    %v148 = vld [vmem:[%s4 + $0x18] sm:$0xff]
    %v149 = vld [vmem:[%s4 + $0x20] sm:$0xff]
    %v150 = vld [vmem:[%s4 + $0x28] sm:$0xff]
    %v151 = vld [vmem:[%s4 + $0x30] sm:$0xff]
    %v152 = vld [vmem:[%s4 + $0x38] sm:$0xff]
    %v153 = vld [vmem:[%s4 + $0x40] sm:$0xff]
    %v154 = vld [vmem:[%s4 + $0x48] sm:$0xff]
    %v155 = vld [vmem:[%s4 + $0x50] sm:$0xff]
    %v156 = vld [vmem:[%s4 + $0x58] sm:$0xff]
    %v157 = vld [vmem:[%s4 + $0x60] sm:$0xff]
    %v158 = vld [vmem:[%s4 + $0x68] sm:$0xff]
    %v159 = vld [vmem:[%s4 + $0x70] sm:$0xff]
    %v160 = vld [vmem:[%s4 + $0x78] sm:$0xff]
    %v161 = vld [vmem:[%s5] sm:$0x1]
    %v163 = vlaneseq
    %v164 = vshrl.u32 %v163, 7
    %v165 = vsub.s32 0, %v164
    %v166 = vrot.slane %v161, %v165
    %168 = vmatprep.subr.mxu0 0.0
    %169 = vmatpush1.msra.mxu0 %v145
    %170 = vmatprep.subr.mxu0 0.0
    %171 = vmatpush1.msra.mxu0 %v146
    %172 = vmatprep.subr.mxu0 0.0
    %173 = vmatpush1.msra.mxu0 %v147
    %174 = vmatprep.subr.mxu0 0.0
    %175 = vmatpush1.msra.mxu0 %v148
    %176 = vmatprep.subr.mxu0 0.0
    %177 = vmatpush1.msra.mxu0 %v149
    %178 = vmatprep.subr.mxu0 0.0
    %179 = vmatpush1.msra.mxu0 %v150
    %180 = vmatprep.subr.mxu0 0.0
    %181 = vmatpush1.msra.mxu0 %v151
    %182 = vmatprep.subr.mxu0 0.0
    %183 = vmatpush1.msra.mxu0 %v152
    %184 = vmatprep.subr.mxu0 0.0
    %185 = vmatpush1.msra.mxu0 %v153
    %186 = vmatprep.subr.mxu0 0.0
    %187 = vmatpush1.msra.mxu0 %v154
    %188 = vmatprep.subr.mxu0 0.0
    %189 = vmatpush1.msra.mxu0 %v155
    %190 = vmatprep.subr.mxu0 0.0
    %191 = vmatpush1.msra.mxu0 %v156
    %192 = vmatprep.subr.mxu0 0.0
    %193 = vmatpush1.msra.mxu0 %v157
    %194 = vmatprep.subr.mxu0 0.0
    %195 = vmatpush1.msra.mxu0 %v158
    %196 = vmatprep.subr.mxu0 0.0
    %197 = vmatpush1.msra.mxu0 %v159
    %198 = vmatprep.subr.mxu0 0.0
    %199 = vmatpush1.msra.mxu0 %v160
    %200 = vmatprep.subr.mxu0 0.0
    %201 = vmatpush1.msra.mxu0 0.0
    %202 = vmatprep.subr.mxu0 0.0
    %203 = vmatpush1.msra.mxu0 0.0
    %204 = vmatprep.subr.mxu0 0.0
    %205 = vmatpush1.msra.mxu0 0.0
    %206 = vmatprep.subr.mxu0 0.0
    %207 = vmatpush1.msra.mxu0 0.0
    %208 = vmatprep.subr.mxu0 0.0
    %209 = vmatpush1.msra.mxu0 0.0
    %210 = vmatprep.subr.mxu0 0.0
    %211 = vmatpush1.msra.mxu0 0.0
    %212 = vmatprep.subr.mxu0 0.0
    %213 = vmatpush1.msra.mxu0 0.0
    %214 = vmatprep.subr.mxu0 0.0
    %215 = vmatpush1.msra.mxu0 0.0
    %216 = vmatprep.subr.mxu0 0.0
    %217 = vmatpush1.msra.mxu0 0.0
    %218 = vmatprep.subr.mxu0 0.0
    %219 = vmatpush1.msra.mxu0 0.0
    %220 = vmatprep.subr.mxu0 0.0
    %221 = vmatpush1.msra.mxu0 0.0
    %222 = vmatprep.subr.mxu0 0.0
    %223 = vmatpush1.msra.mxu0 0.0
    %224 = vmatprep.subr.mxu0 0.0
    %225 = vmatpush1.msra.mxu0 0.0
    %226 = vmatprep.subr.mxu0 0.0
    %227 = vmatpush1.msra.mxu0 0.0
    %228 = vmatprep.subr.mxu0 0.0
    %229 = vmatpush1.msra.mxu0 0.0
    %230 = vmatprep.subr.mxu0 0.0
    %231 = vmatpush1.msra.mxu0 0.0
    %232 = vmatprep.mubr.f32.mxu0 0.0
    %233 = vmatmul.mubr.f32.gmra.mrb[0].mxu0 %v144
    %v234 = vpop.f32.mrb[0].mxu0
    %v235 = vadd.f32 %v166, %v234
    %v236 = vpop.f32.mrb[0].mxu0
    %237 = vdwg.mxu0
    %vm238 = vcmp.ge.f32.partialorder %v235, 0.0
    %v239 = vmul.f32 %v235, 0.01
    %v240 = vsel %vm238, %v235, %v239
    %v241 = vld [vmem:[%s6] sm:$0xff]
    %v242 = vld [vmem:[%s6 + $0x8] sm:$0xff]
    %v243 = vld [vmem:[%s6 + $0x10] sm:$0xff]
    %v244 = vld [vmem:[%s6 + $0x18] sm:$0xff]
    %v245 = vld [vmem:[%s6 + $0x20] sm:$0xff]
    %v246 = vld [vmem:[%s6 + $0x28] sm:$0xff]
    %v247 = vld [vmem:[%s6 + $0x30] sm:$0xff]
    %v248 = vld [vmem:[%s6 + $0x38] sm:$0xff]
    %v249 = vld [vmem:[%s6 + $0x40] sm:$0xff]
    %v250 = vld [vmem:[%s6 + $0x48] sm:$0xff]
    %v251 = vld [vmem:[%s6 + $0x50] sm:$0xff]
    %v252 = vld [vmem:[%s6 + $0x58] sm:$0xff]
    %v253 = vld [vmem:[%s6 + $0x60] sm:$0xff]
    %v254 = vld [vmem:[%s6 + $0x68] sm:$0xff]
    %v255 = vld [vmem:[%s6 + $0x70] sm:$0xff]
    %v256 = vld [vmem:[%s6 + $0x78] sm:$0xff]
    %v257 = vld [vmem:[#allocation2] sm:$0x1]
    %v259 = vlaneseq
    %v260 = vshrl.u32 %v259, 7
    %v261 = vsub.s32 0, %v260
    %v262 = vrot.slane %v257, %v261
    %264 = vmatprep.subr.mxu0 0.0
    %265 = vmatpush1.msra.mxu0 %v241
    %266 = vmatprep.subr.mxu0 0.0
    %267 = vmatpush1.msra.mxu0 %v242
    %268 = vmatprep.subr.mxu0 0.0
    %269 = vmatpush1.msra.mxu0 %v243
    %270 = vmatprep.subr.mxu0 0.0
    %271 = vmatpush1.msra.mxu0 %v244
    %272 = vmatprep.subr.mxu0 0.0
    %273 = vmatpush1.msra.mxu0 %v245
    %274 = vmatprep.subr.mxu0 0.0
    %275 = vmatpush1.msra.mxu0 %v246
    %276 = vmatprep.subr.mxu0 0.0
    %277 = vmatpush1.msra.mxu0 %v247
    %278 = vmatprep.subr.mxu0 0.0
    %279 = vmatpush1.msra.mxu0 %v248
    %280 = vmatprep.subr.mxu0 0.0
    %281 = vmatpush1.msra.mxu0 %v249
    %282 = vmatprep.subr.mxu0 0.0
    %283 = vmatpush1.msra.mxu0 %v250
    %284 = vmatprep.subr.mxu0 0.0
    %285 = vmatpush1.msra.mxu0 %v251
    %286 = vmatprep.subr.mxu0 0.0
    %287 = vmatpush1.msra.mxu0 %v252
    %288 = vmatprep.subr.mxu0 0.0
    %289 = vmatpush1.msra.mxu0 %v253
    %290 = vmatprep.subr.mxu0 0.0
    %291 = vmatpush1.msra.mxu0 %v254
    %292 = vmatprep.subr.mxu0 0.0
    %293 = vmatpush1.msra.mxu0 %v255
    %294 = vmatprep.subr.mxu0 0.0
    %295 = vmatpush1.msra.mxu0 %v256
    %296 = vmatprep.subr.mxu0 0.0
    %297 = vmatpush1.msra.mxu0 0.0
    %298 = vmatprep.subr.mxu0 0.0
    %299 = vmatpush1.msra.mxu0 0.0
    %300 = vmatprep.subr.mxu0 0.0
    %301 = vmatpush1.msra.mxu0 0.0
    %302 = vmatprep.subr.mxu0 0.0
    %303 = vmatpush1.msra.mxu0 0.0
    %304 = vmatprep.subr.mxu0 0.0
    %305 = vmatpush1.msra.mxu0 0.0
    %306 = vmatprep.subr.mxu0 0.0
    %307 = vmatpush1.msra.mxu0 0.0
    %308 = vmatprep.subr.mxu0 0.0
    %309 = vmatpush1.msra.mxu0 0.0
    %310 = vmatprep.subr.mxu0 0.0
    %311 = vmatpush1.msra.mxu0 0.0
    %312 = vmatprep.subr.mxu0 0.0
    %313 = vmatpush1.msra.mxu0 0.0
    %314 = vmatprep.subr.mxu0 0.0
    %315 = vmatpush1.msra.mxu0 0.0
    %316 = vmatprep.subr.mxu0 0.0
    %317 = vmatpush1.msra.mxu0 0.0
    %318 = vmatprep.subr.mxu0 0.0
    %319 = vmatpush1.msra.mxu0 0.0
    %320 = vmatprep.subr.mxu0 0.0
    %321 = vmatpush1.msra.mxu0 0.0
    %322 = vmatprep.subr.mxu0 0.0
    %323 = vmatpush1.msra.mxu0 0.0
    %324 = vmatprep.subr.mxu0 0.0
    %325 = vmatpush1.msra.mxu0 0.0
    %326 = vmatprep.subr.mxu0 0.0
    %327 = vmatpush1.msra.mxu0 0.0
    %328 = vmatprep.mubr.f32.mxu0 0.0
    %329 = vmatmul.mubr.f32.gmra.mrb[0].mxu0 %v240
    %v330 = vpop.f32.mrb[0].mxu0
    %v331 = vadd.f32 %v262, %v330
    %v332 = vpop.f32.mrb[0].mxu0
    %333 = vdwg.mxu0
    %v334 = vmax.f32 %v331, -6.0
    %v335 = vmin.f32 %v334, 6.0
    %v336 = vld [vmem:[%s8] sm:$0xff]
    %v337 = vld [vmem:[%s8 + $0x8] sm:$0xff]
    %v338 = vld [vmem:[%s8 + $0x10] sm:$0xff]
    %v339 = vld [vmem:[%s8 + $0x18] sm:$0xff]
    %v340 = vld [vmem:[%s9] sm:$0xf]
    %v341 = vld [vmem:[%s10] sm:$0xff]
    %343 = vrot.lane.b32.xlu0 %v331, 88
    %v344 = vpop.permute.xlu0 %343
    %vm345 = vcmask 31744
    %v346 = vsel %vm345, %v344, 0
    %v349 = vsel %vm68, %v340, 0
    %351 = vmatprep.subr.mxu0 0.0
    %352 = vmatpush1.msra.mxu0 %v349
    %353 = vmatprep.subr.mxu0 0.0
    %354 = vmatpush1.msra.mxu0 0.0
    %355 = vmatprep.subr.mxu0 0.0
    %356 = vmatpush1.msra.mxu0 0.0
    %357 = vmatprep.subr.mxu0 0.0
    %358 = vmatpush1.msra.mxu0 0.0
    %359 = vmatprep.subr.mxu0 0.0
    %360 = vmatpush1.msra.mxu0 0.0
    %361 = vmatprep.subr.mxu0 0.0
    %362 = vmatpush1.msra.mxu0 0.0
    %363 = vmatprep.subr.mxu0 0.0
    %364 = vmatpush1.msra.mxu0 0.0
    %365 = vmatprep.subr.mxu0 0.0
    %366 = vmatpush1.msra.mxu0 0.0
    %367 = vmatprep.subr.mxu0 0.0
    %368 = vmatpush1.msra.mxu0 0.0
    %369 = vmatprep.subr.mxu0 0.0
    %370 = vmatpush1.msra.mxu0 0.0
    %371 = vmatprep.subr.mxu0 0.0
    %372 = vmatpush1.msra.mxu0 0.0
    %373 = vmatprep.subr.mxu0 0.0
    %374 = vmatpush1.msra.mxu0 0.0
    %375 = vmatprep.subr.mxu0 0.0
    %376 = vmatpush1.msra.mxu0 0.0
    %377 = vmatprep.subr.mxu0 0.0
    %378 = vmatpush1.msra.mxu0 0.0
    %379 = vmatprep.subr.mxu0 0.0
    %380 = vmatpush1.msra.mxu0 0.0
    %381 = vmatprep.subr.mxu0 0.0
    %382 = vmatpush1.msra.mxu0 0.0
    %383 = vmatprep.subr.mxu0 0.0
    %384 = vmatpush1.msra.mxu0 0.0
    %385 = vmatprep.subr.mxu0 0.0
    %386 = vmatpush1.msra.mxu0 0.0
    %387 = vmatprep.subr.mxu0 0.0
    %388 = vmatpush1.msra.mxu0 0.0
    %389 = vmatprep.subr.mxu0 0.0
    %390 = vmatpush1.msra.mxu0 0.0
    %391 = vmatprep.subr.mxu0 0.0
    %392 = vmatpush1.msra.mxu0 0.0
    %393 = vmatprep.subr.mxu0 0.0
    %394 = vmatpush1.msra.mxu0 0.0
    %395 = vmatprep.subr.mxu0 0.0
    %396 = vmatpush1.msra.mxu0 0.0
    %397 = vmatprep.subr.mxu0 0.0
    %398 = vmatpush1.msra.mxu0 0.0
    %399 = vmatprep.subr.mxu0 0.0
    %400 = vmatpush1.msra.mxu0 0.0
    %401 = vmatprep.subr.mxu0 0.0
    %402 = vmatpush1.msra.mxu0 0.0
    %403 = vmatprep.subr.mxu0 0.0
    %404 = vmatpush1.msra.mxu0 0.0
    %405 = vmatprep.subr.mxu0 0.0
    %406 = vmatpush1.msra.mxu0 0.0
    %407 = vmatprep.subr.mxu0 0.0
    %408 = vmatpush1.msra.mxu0 0.0
    %409 = vmatprep.subr.mxu0 0.0
    %410 = vmatpush1.msra.mxu0 0.0
    %411 = vmatprep.subr.mxu0 0.0
    %412 = vmatpush1.msra.mxu0 0.0
    %413 = vmatprep.subr.mxu0 0.0
    %414 = vmatpush1.msra.mxu0 0.0
    %415 = vmatprep.mubr.f32.mxu0 0.0
    %416 = vmatmul.mubr.f32.gmra.mrb[0].mxu0 %v346
    %v417 = vpop.f32.mrb[0].mxu0
    %v418 = vadd.f32 0.0, %v417
    %v419 = vpop.f32.mrb[0].mxu0
    %420 = vdwg.mxu0
    %v421 = vsub.f32 %v331, %v418
    %v422 = vmul.f32 %v421, %v421
    %vm423 = vcmask 261120
    %v425 = vsel %vm423, %v422, 0
    %427 = vmatprep.subr.mxu0 0.0
    %428 = vmatpush1.msra.mxu0 %v336
    %429 = vmatprep.subr.mxu0 0.0
    %430 = vmatpush1.msra.mxu0 %v337
    %431 = vmatprep.subr.mxu0 0.0
    %432 = vmatpush1.msra.mxu0 %v338
    %433 = vmatprep.subr.mxu0 0.0
    %434 = vmatpush1.msra.mxu0 %v339
    %435 = vmatprep.subr.mxu0 0.0
    %436 = vmatpush1.msra.mxu0 0.0
    %437 = vmatprep.subr.mxu0 0.0
    %438 = vmatpush1.msra.mxu0 0.0
    %439 = vmatprep.subr.mxu0 0.0
    %440 = vmatpush1.msra.mxu0 0.0
    %441 = vmatprep.subr.mxu0 0.0
    %442 = vmatpush1.msra.mxu0 0.0
    %443 = vmatprep.subr.mxu0 0.0
    %444 = vmatpush1.msra.mxu0 0.0
    %445 = vmatprep.subr.mxu0 0.0
    %446 = vmatpush1.msra.mxu0 0.0
    %447 = vmatprep.subr.mxu0 0.0
    %448 = vmatpush1.msra.mxu0 0.0
    %449 = vmatprep.subr.mxu0 0.0
    %450 = vmatpush1.msra.mxu0 0.0
    %451 = vmatprep.subr.mxu0 0.0
    %452 = vmatpush1.msra.mxu0 0.0
    %453 = vmatprep.subr.mxu0 0.0
    %454 = vmatpush1.msra.mxu0 0.0
    %455 = vmatprep.subr.mxu0 0.0
    %456 = vmatpush1.msra.mxu0 0.0
    %457 = vmatprep.subr.mxu0 0.0
    %458 = vmatpush1.msra.mxu0 0.0
    %459 = vmatprep.subr.mxu0 0.0
    %460 = vmatpush1.msra.mxu0 0.0
    %461 = vmatprep.subr.mxu0 0.0
    %462 = vmatpush1.msra.mxu0 0.0
    %463 = vmatprep.subr.mxu0 0.0
    %464 = vmatpush1.msra.mxu0 0.0
    %465 = vmatprep.subr.mxu0 0.0
    %466 = vmatpush1.msra.mxu0 0.0
    %467 = vmatprep.subr.mxu0 0.0
    %468 = vmatpush1.msra.mxu0 0.0
    %469 = vmatprep.subr.mxu0 0.0
    %470 = vmatpush1.msra.mxu0 0.0
    %471 = vmatprep.subr.mxu0 0.0
    %472 = vmatpush1.msra.mxu0 0.0
    %473 = vmatprep.subr.mxu0 0.0
    %474 = vmatpush1.msra.mxu0 0.0
    %475 = vmatprep.subr.mxu0 0.0
    %476 = vmatpush1.msra.mxu0 0.0
    %477 = vmatprep.subr.mxu0 0.0
    %478 = vmatpush1.msra.mxu0 0.0
    %479 = vmatprep.subr.mxu0 0.0
    %480 = vmatpush1.msra.mxu0 0.0
    %481 = vmatprep.subr.mxu0 0.0
    %482 = vmatpush1.msra.mxu0 0.0
    %483 = vmatprep.subr.mxu0 0.0
    %484 = vmatpush1.msra.mxu0 0.0
    %485 = vmatprep.subr.mxu0 0.0
    %486 = vmatpush1.msra.mxu0 0.0
    %487 = vmatprep.subr.mxu0 0.0
    %488 = vmatpush1.msra.mxu0 0.0
    %489 = vmatprep.subr.mxu0 0.0
    %490 = vmatpush1.msra.mxu0 0.0
    %491 = vmatprep.mubr.f32.mxu0 0.0
    %492 = vmatmul.mubr.f32.gmra.mrb[0].mxu0 %v425
    %v493 = vpop.f32.mrb[0].mxu0
    %v494 = vadd.f32 0.0, %v493
    %v495 = vpop.f32.mrb[0].mxu0
    %496 = vdwg.mxu0
    %v497 = vmul.f32 %v494, 0.125
    %v498 = vadd.f32 %v497, 1e-05
    %v499 = vrsqrt.pop %v498
    %501 = vrot.lane.b32.xlu0 %v335, 4
    %v502 = vpop.permute.xlu0 %501
    %v504 = vsub.f32 %v335, %v502
    %v505 = vsub.f32 0.0, %v504
    %v506 = vmax.f32 %v505, 0.0
    %v507 = vand.u32 2147483647, %v505
    %v508 = vsub.f32 0.0, %v507
    %v509 = vmul.f32 %v508, 1.442695
    %v510 = vpow.pop %v509
    %v511 = vadd.f32 %v510, 1.0
    %v512 = vlog2.pop %v511
    %v513 = vmul.f32 %v512, 0.6931472
    %v514 = vadd.f32 %v506, %v513
    %v515 = vsub.f32 0.0, %v514
    %v516 = vmul.f32 %v515, 1.442695
    %v517 = vpow.pop %v516
    %v518 = vsub.f32 1.0, %v517
    %v519 = vmul.f32 %v514, -2.0
    %521 = vrot.lane.b32.xlu0 %v518, 92
    %v522 = vpop.permute.xlu0 %521
    %v524 = vmul.f32 %v499, %v522
    %526 = vrot.lane.b32.xlu0 %v517, 96
    %v527 = vpop.permute.xlu0 %526
    %v529 = vsel %vm345, %v524, %v527
    %vm530 = vcmask 64512
    %v532 = vsel %vm530, %v529, 0
    %534 = vmatprep.subr.mxu0 0.0
    %535 = vmatpush1.msra.mxu0 %v341
    %536 = vmatprep.subr.mxu0 0.0
    %537 = vmatpush1.msra.mxu0 0.0
    %538 = vmatprep.subr.mxu0 0.0
    %539 = vmatpush1.msra.mxu0 0.0
    %540 = vmatprep.subr.mxu0 0.0
    %541 = vmatpush1.msra.mxu0 0.0
    %542 = vmatprep.subr.mxu0 0.0
    %543 = vmatpush1.msra.mxu0 0.0
    %544 = vmatprep.subr.mxu0 0.0
    %545 = vmatpush1.msra.mxu0 0.0
    %546 = vmatprep.subr.mxu0 0.0
    %547 = vmatpush1.msra.mxu0 0.0
    %548 = vmatprep.subr.mxu0 0.0
    %549 = vmatpush1.msra.mxu0 0.0
    %550 = vmatprep.subr.mxu0 0.0
    %551 = vmatpush1.msra.mxu0 0.0
    %552 = vmatprep.subr.mxu0 0.0
    %553 = vmatpush1.msra.mxu0 0.0
    %554 = vmatprep.subr.mxu0 0.0
    %555 = vmatpush1.msra.mxu0 0.0
    %556 = vmatprep.subr.mxu0 0.0
    %557 = vmatpush1.msra.mxu0 0.0
    %558 = vmatprep.subr.mxu0 0.0
    %559 = vmatpush1.msra.mxu0 0.0
    %560 = vmatprep.subr.mxu0 0.0
    %561 = vmatpush1.msra.mxu0 0.0
    %562 = vmatprep.subr.mxu0 0.0
    %563 = vmatpush1.msra.mxu0 0.0
    %564 = vmatprep.subr.mxu0 0.0
    %565 = vmatpush1.msra.mxu0 0.0
    %566 = vmatprep.subr.mxu0 0.0
    %567 = vmatpush1.msra.mxu0 0.0
    %568 = vmatprep.subr.mxu0 0.0
    %569 = vmatpush1.msra.mxu0 0.0
    %570 = vmatprep.subr.mxu0 0.0
    %571 = vmatpush1.msra.mxu0 0.0
    %572 = vmatprep.subr.mxu0 0.0
    %573 = vmatpush1.msra.mxu0 0.0
    %574 = vmatprep.subr.mxu0 0.0
    %575 = vmatpush1.msra.mxu0 0.0
    %576 = vmatprep.subr.mxu0 0.0
    %577 = vmatpush1.msra.mxu0 0.0
    %578 = vmatprep.subr.mxu0 0.0
    %579 = vmatpush1.msra.mxu0 0.0
    %580 = vmatprep.subr.mxu0 0.0
    %581 = vmatpush1.msra.mxu0 0.0
    %582 = vmatprep.subr.mxu0 0.0
    %583 = vmatpush1.msra.mxu0 0.0
    %584 = vmatprep.subr.mxu0 0.0
    %585 = vmatpush1.msra.mxu0 0.0
    %586 = vmatprep.subr.mxu0 0.0
    %587 = vmatpush1.msra.mxu0 0.0
    %588 = vmatprep.subr.mxu0 0.0
    %589 = vmatpush1.msra.mxu0 0.0
    %590 = vmatprep.subr.mxu0 0.0
    %591 = vmatpush1.msra.mxu0 0.0
    %592 = vmatprep.subr.mxu0 0.0
    %593 = vmatpush1.msra.mxu0 0.0
    %594 = vmatprep.subr.mxu0 0.0
    %595 = vmatpush1.msra.mxu0 0.0
    %596 = vmatprep.subr.mxu0 0.0
    %597 = vmatpush1.msra.mxu0 0.0
    %598 = vmatprep.mubr.f32.mxu0 0.0
    %599 = vmatmul.mubr.f32.gmra.mrb[0].mxu0 %v532
    %v600 = vpop.f32.mrb[0].mxu0
    %v601 = vadd.f32 0.0, %v600
    %v602 = vpop.f32.mrb[0].mxu0
    %603 = vdwg.mxu0
    %v604 = vmul.f32 %v421, %v601
    %v605 = vld [vmem:[%s1] sm:$0xff]
    %607 = vrot.lane.b32.xlu0 %v601, 96
    %v608 = vpop.permute.xlu0 %607
    %v610 = vmul.f32 %v605, %v608
    %v611 = vadd.f32 %v604, %v610
    %v612 = vmul.f32 %v604, %v604
    %v613 = vmul.f32 %v517, %v517
    %v614 = vsub.f32 %v613, 1.0
    %v615 = vsub.f32 %v614, %v519
    %v616 = vmul.f32 %v615, 8.0
    %618 = vrot.lane.b32.xlu0 %v616, 92
    %v619 = vpop.permute.xlu0 %618
    %v622 = vsel %vm423, %v612, 0
    %624 = vmatprep.subr.mxu0 0.0
    %625 = vmatpush1.msra.mxu0 %v336
    %626 = vmatprep.subr.mxu0 0.0
    %627 = vmatpush1.msra.mxu0 %v337
    %628 = vmatprep.subr.mxu0 0.0
    %629 = vmatpush1.msra.mxu0 %v338
    %630 = vmatprep.subr.mxu0 0.0
    %631 = vmatpush1.msra.mxu0 %v339
    %632 = vmatprep.subr.mxu0 0.0
    %633 = vmatpush1.msra.mxu0 0.0
    %634 = vmatprep.subr.mxu0 0.0
    %635 = vmatpush1.msra.mxu0 0.0
    %636 = vmatprep.subr.mxu0 0.0
    %637 = vmatpush1.msra.mxu0 0.0
    %638 = vmatprep.subr.mxu0 0.0
    %639 = vmatpush1.msra.mxu0 0.0
    %640 = vmatprep.subr.mxu0 0.0
    %641 = vmatpush1.msra.mxu0 0.0
    %642 = vmatprep.subr.mxu0 0.0
    %643 = vmatpush1.msra.mxu0 0.0
    %644 = vmatprep.subr.mxu0 0.0
    %645 = vmatpush1.msra.mxu0 0.0
    %646 = vmatprep.subr.mxu0 0.0
    %647 = vmatpush1.msra.mxu0 0.0
    %648 = vmatprep.subr.mxu0 0.0
    %649 = vmatpush1.msra.mxu0 0.0
    %650 = vmatprep.subr.mxu0 0.0
    %651 = vmatpush1.msra.mxu0 0.0
    %652 = vmatprep.subr.mxu0 0.0
    %653 = vmatpush1.msra.mxu0 0.0
    %654 = vmatprep.subr.mxu0 0.0
    %655 = vmatpush1.msra.mxu0 0.0
    %656 = vmatprep.subr.mxu0 0.0
    %657 = vmatpush1.msra.mxu0 0.0
    %658 = vmatprep.subr.mxu0 0.0
    %659 = vmatpush1.msra.mxu0 0.0
    %660 = vmatprep.subr.mxu0 0.0
    %661 = vmatpush1.msra.mxu0 0.0
    %662 = vmatprep.subr.mxu0 0.0
    %663 = vmatpush1.msra.mxu0 0.0
    %664 = vmatprep.subr.mxu0 0.0
    %665 = vmatpush1.msra.mxu0 0.0
    %666 = vmatprep.subr.mxu0 0.0
    %667 = vmatpush1.msra.mxu0 0.0
    %668 = vmatprep.subr.mxu0 0.0
    %669 = vmatpush1.msra.mxu0 0.0
    %670 = vmatprep.subr.mxu0 0.0
    %671 = vmatpush1.msra.mxu0 0.0
    %672 = vmatprep.subr.mxu0 0.0
    %673 = vmatpush1.msra.mxu0 0.0
    %674 = vmatprep.subr.mxu0 0.0
    %675 = vmatpush1.msra.mxu0 0.0
    %676 = vmatprep.subr.mxu0 0.0
    %677 = vmatpush1.msra.mxu0 0.0
    %678 = vmatprep.subr.mxu0 0.0
    %679 = vmatpush1.msra.mxu0 0.0
    %680 = vmatprep.subr.mxu0 0.0
    %681 = vmatpush1.msra.mxu0 0.0
    %682 = vmatprep.subr.mxu0 0.0
    %683 = vmatpush1.msra.mxu0 0.0
    %684 = vmatprep.subr.mxu0 0.0
    %685 = vmatpush1.msra.mxu0 0.0
    %686 = vmatprep.subr.mxu0 0.0
    %687 = vmatpush1.msra.mxu0 0.0
    %688 = vmatprep.mubr.f32.mxu0 0.0
    %689 = vmatmul.mubr.f32.gmra.mrb[0].mxu0 %v622
    %v690 = vpop.f32.mrb[0].mxu0
    %v691 = vadd.f32 %v619, %v690
    %v692 = vpop.f32.mrb[0].mxu0
    %693 = vdwg.mxu0
    %v694 = vmul.f32 %v691, 0.5
    %696 = vrot.lane.b32.xlu0 %v694, 32
    %v697 = vpop.permute.xlu0 %696
    %v699 = vsel %vm423, %v611, %v697
    %v700 = vsel %vm64, %v699, 0.0
    %701 = vst [vmem:[#allocation5] sm:$0xff] %v700
    // Predicated region
    $region50: #{tpu_custom_call.1} parent=1 // pred_check
      _
    $region51: #{tpu_custom_call.1} parent=1 // pred_check_branch
      %703 = sbr.rel (0) target = $region53
    $region52: #{tpu_custom_call.1} parent=1 // pred_region
      %s705 = ssub.s32 128, 128
      %706 = vsyncadd [#allocation4], %s705
      %s708 = sshll.u32 [#allocation5], 4
      %s709 = int_to_ptr.vmem [resolvable:$true] %s708
      %711 = dma.vmem_to_hbm [thread:$0]  %s709, 128, %s11, [#allocation4]
    $region53: #{tpu_custom_call.1} parent=1 // pred_fallthru
      _
    // Predicated region
    $region54: #{tpu_custom_call.1} parent=1 // pred_check
      _
    $region55: #{tpu_custom_call.1} parent=1 // pred_check_branch
      %713 = sbr.rel (0) target = $region57
    $region56: #{tpu_custom_call.1} parent=1 // pred_region
      %714 = dma.done [#allocation4], 128
    $region57: #{tpu_custom_call.1} parent=1 // pred_fallthru
      _
    %715 = vsyncpa [#allocation3], 1
    %716 = vsyncpa [#allocation4], 1

</llo_original>
